<compile_context>
chip_gen: v7x
topology: tpu7x:2x2x1
jax: 0.10.0
libtpu: 0.0.40
codegen_flags: <defaults>
</compile_context>

<pallas_src>
import jax
import jax.numpy as jnp
import numpy as np
from jax.experimental import pallas as pl
from jax.experimental.pallas import tpu as pltpu


# ----------------------------------------------------------------------------
# Fused Pallas kernel (one batch sample per grid step)
# ----------------------------------------------------------------------------
def _decoder_block_kernel(x_ref, w1_ref, w2_ref, we_ref, wo_ref,
                          a1_ref, a2_ref, at_ref, o_ref,
                          xpad_ref, h1pad_ref, h2pad_ref):
    # x_ref  : (1, H, W*Cin)  f32   lane-dense input rows
    # w1_ref : (3*W*Cin, W*C) bf16  row-banded conv1 weight
    # w2_ref : (3*W*C,   W*C) bf16  row-banded conv2 weight
    # we_ref : (W*C,   2*W*Ct) bf16 sub-pixel convT weight (even output rows)
    # wo_ref : (2*W*C, 2*W*Ct) bf16 sub-pixel convT weight (odd output rows)
    # a1/a2  : (2, W*C)   f32  folded BN [scale; shift], tiled across the row
    # at     : (2, 2*W*Ct) f32 folded BN [scale; shift] for the upsampling stage
    # o_ref  : (1, 2, H, 2*W*Ct) f32  output (parity, row) layout, lane-dense
    # *_pad_ref : VMEM scratch rows with zero halos
    h = x_ref.shape[1]

    # Zero the halo scratch buffers (interior rows are overwritten below).
    xpad_ref[...] = jnp.zeros(xpad_ref.shape, xpad_ref.dtype)
    h1pad_ref[...] = jnp.zeros(h1pad_ref.shape, h1pad_ref.dtype)
    h2pad_ref[...] = jnp.zeros(h2pad_ref.shape, h2pad_ref.dtype)

    def conv_row_matmul(pad_ref, w_ref, a_ref):
        # 3x3 / stride-1 / pad-1 conv + folded BN + ReLU as ONE row-banded matmul
        # over lane-dense (H, W*C) rows.  Left/right padding is encoded in the
        # banded weight; top/bottom padding comes from the zero halo rows.
        lhs = jnp.concatenate(
            [pad_ref[0:h, :], pad_ref[1:h + 1, :], pad_ref[2:h + 2, :]], axis=1)
        acc = jnp.dot(lhs.astype(w_ref.dtype), w_ref[...],
                      preferred_element_type=jnp.float32)
        return jnp.maximum(acc * a_ref[0:1, :] + a_ref[1:2, :], 0.0)

    # ---- ConvBlock: conv1 + BN1 + ReLU, conv2 + BN2 + ReLU ------------------
    xpad_ref[1:h + 1, :] = x_ref[0]
    h1 = conv_row_matmul(xpad_ref, w1_ref, a1_ref)          # (H, W*C)
    h1pad_ref[1:h + 1, :] = h1
    h2 = conv_row_matmul(h1pad_ref, w2_ref, a2_ref)         # (H, W*C)
    # TODO(synk): nn.Dropout is identity in eval mode; training-mode random masking
    # is not modeled.

    # ---- Upsampling: ConvTranspose2d(k=3, s=2, p=1, op=(1,1)) + BN + ReLU ----
    # Sub-pixel decomposition: even output rows depend on input row i only,
    # odd output rows on rows i and i+1 (bottom zero halo in h2pad_ref).
    h2pad_ref[0:h, :] = h2
    lhs_o = jnp.concatenate([h2pad_ref[0:h, :], h2pad_ref[1:h + 1, :]], axis=1)
    ye = jnp.dot(h2.astype(we_ref.dtype), we_ref[...],
                 preferred_element_type=jnp.float32)        # (H, 2*W*Ct)
    yo = jnp.dot(lhs_o.astype(wo_ref.dtype), wo_ref[...],
                 preferred_element_type=jnp.float32)        # (H, 2*W*Ct)
    scale, shift = at_ref[0:1, :], at_ref[1:2, :]
    o_ref[0, 0] = jnp.maximum(ye * scale + shift, 0.0).astype(o_ref.dtype)
    o_ref[0, 1] = jnp.maximum(yo * scale + shift, 0.0).astype(o_ref.dtype)


# ----------------------------------------------------------------------------
# Wrapper-side weight / BN preparation (plain JAX, traced once under jit)
# ----------------------------------------------------------------------------
def _fold_bn(conv_bias, gamma, beta, mean, var, eps=1e-5):
    scale = gamma / jnp.sqrt(var + eps)
    shift = beta + (conv_bias - mean) * scale
    return scale, shift


def _banded_conv_weight(w_oihw, width, dtype=jnp.bfloat16):
    """3x3 stride-1 pad-1 conv as a single row-banded matmul weight.

    LHS columns are [dy | pixel p | ci] over lane-dense padded rows,
    output columns are [pixel j | co]; nonzero blocks at p in {j-1, j, j+1}.
    Returns (3*width*cin, width*cout).
    """
    w_hwio = jnp.transpose(w_oihw, (2, 3, 1, 0))            # (3, 3, cin, cout)
    sel = np.zeros((width, 3, width), np.float32)           # [p, dx, j]
    for j in range(width):
        for dx in range(3):
            p = j + dx - 1
            if 0 <= p < width:
                sel[p, dx, j] = 1.0
    m = jnp.einsum('pxj,yxio->ypijo', jnp.asarray(sel), w_hwio)
    _, _, cin, _, cout = m.shape
    return m.reshape(3 * width * cin, width * cout).astype(dtype)


def _banded_convT_weights(wt_iohw, width, dtype=jnp.bfloat16):
    """ConvTranspose2d(k=3, s=2, p=1, output_padding=(1,1)) as two row-banded
    matmuls via the sub-pixel (even / odd output row) decomposition."""
    cin_t, cout_t = wt_iohw.shape[0], wt_iohw.shape[1]
    # Equivalent forward-conv weight (HWIO): w_eq[dy, dx, ci, co] = wt[ci, co, 2-dy, 2-dx]
    w_eq = jnp.transpose(wt_iohw[:, :, ::-1, ::-1], (2, 3, 0, 1))
    sel = np.zeros((width, 3, 2 * width), np.float32)       # [p, dx, m]  (m = output col)
    for m_col in range(2 * width):
        for dx in range(3):
            if (m_col + dx) % 2 == 1:
                p = (m_col + dx - 1) // 2
                if 0 <= p < width:
                    sel[p, dx, m_col] = 1.0
    sel = jnp.asarray(sel)

    def band(dy):
        m = jnp.einsum('pxm,xio->pimo', sel, w_eq[dy])
        return m.reshape(width * cin_t, 2 * width * cout_t)

    we = band(1)                                             # even output rows (row i)
    wo = jnp.concatenate([band(0), band(2)], axis=0)         # odd rows: [row i | row i+1]
    return we.astype(dtype), wo.astype(dtype)


def decoder_block_forward(x_nchw, p):
    """Decoder_block.forward: ConvBlock -> Dropout(eval) -> Upsampling, fused."""
    n, cin, h, w = x_nchw.shape
    cmid = p["w1"].shape[0]          # output_dim
    ct = p["wt"].shape[1]            # output_dim // 2

    # NCHW -> lane-dense rows (N, H, W*Cin): channels folded into the lane axis.
    x_rows = jnp.transpose(x_nchw, (0, 2, 3, 1)).reshape(n, h, w * cin)

    # Row-banded matmul weights (bf16 for the MXU; f32 accumulate in-kernel).
    w1 = _banded_conv_weight(p["w1"], w)
    w2 = _banded_conv_weight(p["w2"], w)
    we, wo = _banded_convT_weights(p["wt"], w)

    # Folded BatchNorm (inference stats) + conv bias, tiled across a full row.
    s1, b1 = _fold_bn(p["b1"], p["g1"], p["be1"], p["m1"], p["v1"])
    s2, b2 = _fold_bn(p["b2"], p["g2"], p["be2"], p["m2"], p["v2"])
    st, bt = _fold_bn(p["bt"], p["gt"], p["bet"], p["mt"], p["vt"])
    a1 = jnp.stack([jnp.tile(s1, w), jnp.tile(b1, w)])            # (2, W*C)
    a2 = jnp.stack([jnp.tile(s2, w), jnp.tile(b2, w)])            # (2, W*C)
    at = jnp.stack([jnp.tile(st, 2 * w), jnp.tile(bt, 2 * w)])    # (2, 2*W*Ct)

    out = pl.pallas_call(
        _decoder_block_kernel,
        out_shape=jax.ShapeDtypeStruct((n, 2, h, 2 * w * ct), jnp.float32),
        grid=(n,),
        in_specs=[
            pl.BlockSpec((1, h, w * cin), lambda i: (i, 0, 0)),
            pl.BlockSpec(w1.shape, lambda i: (0, 0)),
            pl.BlockSpec(w2.shape, lambda i: (0, 0)),
            pl.BlockSpec(we.shape, lambda i: (0, 0)),
            pl.BlockSpec(wo.shape, lambda i: (0, 0)),
            pl.BlockSpec(a1.shape, lambda i: (0, 0)),
            pl.BlockSpec(a2.shape, lambda i: (0, 0)),
            pl.BlockSpec(at.shape, lambda i: (0, 0)),
        ],
        out_specs=pl.BlockSpec((1, 2, h, 2 * w * ct), lambda i: (i, 0, 0, 0)),
        scratch_shapes=[
            pltpu.VMEM((h + 2, w * cin), jnp.float32),    # padded input rows
            pltpu.VMEM((h + 2, w * cmid), jnp.float32),   # padded conv1 output rows
            pltpu.VMEM((h + 1, w * cmid), jnp.float32),   # conv2 output + bottom halo
        ],
        compiler_params=pltpu.CompilerParams(
            dimension_semantics=("parallel",),
            vmem_limit_bytes=32 * 1024 * 1024,
        ),
    )(x_rows, w1, w2, we, wo, a1, a2, at)

    # (N, parity, H, 2W*Ct) -> (N, Ct, 2H, 2W)
    out = out.reshape(n, 2, h, 2 * w, ct)
    return jnp.transpose(out, (0, 4, 2, 1, 3)).reshape(n, ct, 2 * h, 2 * w)


# ----------------------------------------------------------------------------
# Deterministic parameter init (shapes per the PyTorch __init__)
# ----------------------------------------------------------------------------
def init_decoder_params(key, input_dim, output_dim):
    ks = jax.random.split(key, 6)

    def kaiming(k, shape, fan_in):
        return jax.random.normal(k, shape, jnp.float32) * jnp.sqrt(2.0 / fan_in)

    def bias(k, n, fan_in):
        b = 1.0 / jnp.sqrt(fan_in)
        return jax.random.uniform(k, (n,), jnp.float32, -b, b)

    half = output_dim // 2
    p = {
        "w1": kaiming(ks[0], (output_dim, input_dim, 3, 3), input_dim * 9),
        "b1": bias(ks[1], output_dim, input_dim * 9),
        "w2": kaiming(ks[2], (output_dim, output_dim, 3, 3), output_dim * 9),
        "b2": bias(ks[3], output_dim, output_dim * 9),
        "wt": kaiming(ks[4], (output_dim, half, 3, 3), half * 9),
        "bt": bias(ks[5], half, output_dim * 9),
    }
    for tag, c in (("1", output_dim), ("2", output_dim), ("t", half)):
        p["g" + tag] = jnp.ones((c,), jnp.float32)
        p["be" + tag] = jnp.zeros((c,), jnp.float32)
        p["m" + tag] = jnp.zeros((c,), jnp.float32)
        p["v" + tag] = jnp.ones((c,), jnp.float32)
    return p


# ----------------------------------------------------------------------------
# Pure-JAX (XLA conv, float32) reference for correctness checking
# ----------------------------------------------------------------------------
def _ref_decoder(x_nchw, p, eps=1e-5):
    dn = ("NCHW", "OIHW", "NCHW")

    def bn(x, g, be, m, v):
        return ((x - m[None, :, None, None]) / jnp.sqrt(v[None, :, None, None] + eps)
                * g[None, :, None, None] + be[None, :, None, None])

    def conv(x, w, b):
        y = jax.lax.conv_general_dilated(x, w, (1, 1), ((1, 1), (1, 1)),
                                         dimension_numbers=dn)
        return y + b[None, :, None, None]

    h = jax.nn.relu(bn(conv(x_nchw, p["w1"], p["b1"]), p["g1"], p["be1"], p["m1"], p["v1"]))
    h = jax.nn.relu(bn(conv(h, p["w2"], p["b2"]), p["g2"], p["be2"], p["m2"], p["v2"]))
    w_eq = jnp.transpose(p["wt"][:, :, ::-1, ::-1], (1, 0, 2, 3))  # -> OIHW
    y = jax.lax.conv_general_dilated(h, w_eq, (1, 1), ((1, 2), (1, 2)),
                                     lhs_dilation=(2, 2), dimension_numbers=dn)
    y = y + p["bt"][None, :, None, None]
    return jax.nn.relu(bn(y, p["gt"], p["bet"], p["mt"], p["vt"]))


if __name__ == "__main__":
    key = jax.random.PRNGKey(0)
    k_x, k_p = jax.random.split(key)

    N, Cin, H, W = 2, 4, 16, 16
    input_dim, output_dim = Cin, 8          # Decoder_block(4, 8, dropout_rate=0.1)

    x = jax.random.normal(k_x, (N, Cin, H, W), jnp.float32)
    params = init_decoder_params(k_p, input_dim, output_dim)

    fwd = jax.jit(decoder_block_forward)
    out = jax.block_until_ready(fwd(x, params))
    assert out.shape == (N, output_dim // 2, 2 * H, 2 * W), out.shape

    ref = jax.block_until_ready(_ref_decoder(x, params))
    # bf16 MXU inputs (f32 accumulate + f32 epilogue) => relaxed tolerance vs f32 ref.
    rel = float(jnp.sqrt(jnp.sum((out - ref) ** 2) / (jnp.sum(ref ** 2) + 1e-12)))
    assert rel < 2e-2, rel
    assert jnp.allclose(out, ref, atol=1e-1, rtol=5e-2), float(jnp.max(jnp.abs(out - ref)))

    print("KERNEL_OK")
</pallas_src>

<mosaic_0001>
module attributes {stable_mosaic.version = 11 : i64} {
  func.func @_decoder_block_kernel(%arg0: i32, %arg1: memref<1x16x64xf32, #tpu.memory_space<vmem>>, %arg2: memref<192x128xbf16, #tpu.memory_space<vmem>>, %arg3: memref<384x128xbf16, #tpu.memory_space<vmem>>, %arg4: memref<128x128xbf16, #tpu.memory_space<vmem>>, %arg5: memref<256x128xbf16, #tpu.memory_space<vmem>>, %arg6: memref<2x128xf32, #tpu.memory_space<vmem>>, %arg7: memref<2x128xf32, #tpu.memory_space<vmem>>, %arg8: memref<2x128xf32, #tpu.memory_space<vmem>>, %arg9: memref<1x2x16x128xf32, #tpu.memory_space<vmem>>, %arg10: memref<18x64xf32, #tpu.memory_space<vmem>>, %arg11: memref<18x128xf32, #tpu.memory_space<vmem>>, %arg12: memref<17x128xf32, #tpu.memory_space<vmem>>) attributes {dimension_semantics = [#tpu.dimension_semantics<parallel>], iteration_bounds = array<i64: 2>, scalar_prefetch = 0 : i64, scratch_operands = 3 : i64, tpu.core_type = #tpu.core_type<tc>, window_params = [{transform_indices = @transform_0, window_bounds = array<i64: 1, 16, 64>}, {pipeline_mode = #tpu.pipeline_mode<synchronous>, transform_indices = @transform_1, window_bounds = array<i64: 192, 128>}, {pipeline_mode = #tpu.pipeline_mode<synchronous>, transform_indices = @transform_2, window_bounds = array<i64: 384, 128>}, {pipeline_mode = #tpu.pipeline_mode<synchronous>, transform_indices = @transform_3, window_bounds = array<i64: 128, 128>}, {pipeline_mode = #tpu.pipeline_mode<synchronous>, transform_indices = @transform_4, window_bounds = array<i64: 256, 128>}, {pipeline_mode = #tpu.pipeline_mode<synchronous>, transform_indices = @transform_5, window_bounds = array<i64: 2, 128>}, {pipeline_mode = #tpu.pipeline_mode<synchronous>, transform_indices = @transform_6, window_bounds = array<i64: 2, 128>}, {pipeline_mode = #tpu.pipeline_mode<synchronous>, transform_indices = @transform_7, window_bounds = array<i64: 2, 128>}, {transform_indices = @transform_8, window_bounds = array<i64: 1, 2, 16, 128>}]} {
    %cst = arith.constant 0.000000e+00 : f32
    %0 = vector.broadcast %cst : f32 to vector<18x64xf32>
    %c0 = arith.constant 0 : index
    %c0_0 = arith.constant 0 : index
    %1 = vector.load %arg10[%c0, %c0_0] : memref<18x64xf32, #tpu.memory_space<vmem>>, vector<18x64xf32>
    tpu.vector_store %arg10[%c0, %c0_0], %0 {strides = array<i32>} : memref<18x64xf32, #tpu.memory_space<vmem>>, vector<18x64xf32>,
    %cst_1 = arith.constant 0.000000e+00 : f32
    %2 = vector.broadcast %cst_1 : f32 to vector<18x128xf32>
    %c0_2 = arith.constant 0 : index
    %c0_3 = arith.constant 0 : index
    %3 = vector.load %arg11[%c0_2, %c0_3] : memref<18x128xf32, #tpu.memory_space<vmem>>, vector<18x128xf32>
    tpu.vector_store %arg11[%c0_2, %c0_3], %2 {strides = array<i32>} : memref<18x128xf32, #tpu.memory_space<vmem>>, vector<18x128xf32>,
    %cst_4 = arith.constant 0.000000e+00 : f32
    %4 = vector.broadcast %cst_4 : f32 to vector<17x128xf32>
    %c0_5 = arith.constant 0 : index
    %c0_6 = arith.constant 0 : index
    %5 = vector.load %arg12[%c0_5, %c0_6] : memref<17x128xf32, #tpu.memory_space<vmem>>, vector<17x128xf32>
    tpu.vector_store %arg12[%c0_5, %c0_6], %4 {strides = array<i32>} : memref<17x128xf32, #tpu.memory_space<vmem>>, vector<17x128xf32>,
    %c0_7 = arith.constant 0 : index
    %c0_8 = arith.constant 0 : index
    %c0_9 = arith.constant 0 : index
    %6 = vector.load %arg1[%c0_7, %c0_8, %c0_9] : memref<1x16x64xf32, #tpu.memory_space<vmem>>, vector<1x16x64xf32>
    %7 = vector.shape_cast %6 : vector<1x16x64xf32> to vector<16x64xf32>
    %c1 = arith.constant 1 : index
    %c0_10 = arith.constant 0 : index
    %8 = vector.load %arg10[%c1, %c0_10] : memref<18x64xf32, #tpu.memory_space<vmem>>, vector<16x64xf32>
    tpu.vector_store %arg10[%c1, %c0_10], %7 {strides = array<i32>} : memref<18x64xf32, #tpu.memory_space<vmem>>, vector<16x64xf32>,
    %c0_11 = arith.constant 0 : index
    %c0_12 = arith.constant 0 : index
    %9 = vector.load %arg10[%c0_11, %c0_12] : memref<18x64xf32, #tpu.memory_space<vmem>>, vector<16x64xf32>
    %c1_13 = arith.constant 1 : index
    %c0_14 = arith.constant 0 : index
    %10 = vector.load %arg10[%c1_13, %c0_14] : memref<18x64xf32, #tpu.memory_space<vmem>>, vector<16x64xf32>
    %c2 = arith.constant 2 : index
    %c0_15 = arith.constant 0 : index
    %11 = vector.load %arg10[%c2, %c0_15] : memref<18x64xf32, #tpu.memory_space<vmem>>, vector<16x64xf32>
    %12 = tpu.concatenate %9, %10, %11 in 1 : vector<16x64xf32>, vector<16x64xf32>, vector<16x64xf32> -> vector<16x192xf32>
    %13 = arith.truncf %12 : vector<16x192xf32> to vector<16x192xbf16>
    %c0_16 = arith.constant 0 : index
    %c0_17 = arith.constant 0 : index
    %14 = vector.load %arg2[%c0_16, %c0_17] : memref<192x128xbf16, #tpu.memory_space<vmem>>, vector<192x128xbf16>
    %cst_18 = arith.constant dense<0.000000e+00> : vector<16x128xf32>
    %15 = tpu.matmul %13, %14, %cst_18 {dimension_numbers = #tpu.dot_dimension_numbers<[1], [0], [0], [1], [0, 0, 1, 1], [], []>} : vector<16x192xbf16>, vector<192x128xbf16>, vector<16x128xf32> -> vector<16x128xf32>
    %c0_19 = arith.constant 0 : index
    %c0_20 = arith.constant 0 : index
    %16 = vector.load %arg6[%c0_19, %c0_20] : memref<2x128xf32, #tpu.memory_space<vmem>>, vector<1x128xf32>
    %17 = vector.broadcast %16 : vector<1x128xf32> to vector<16x128xf32>
    %18 = arith.mulf %15, %17 : vector<16x128xf32>
    %c1_21 = arith.constant 1 : index
    %c0_22 = arith.constant 0 : index
    %19 = vector.load %arg6[%c1_21, %c0_22] : memref<2x128xf32, #tpu.memory_space<vmem>>, vector<1x128xf32>
    %20 = vector.broadcast %19 : vector<1x128xf32> to vector<16x128xf32>
    %21 = arith.addf %18, %20 : vector<16x128xf32>
    %cst_23 = arith.constant 0.000000e+00 : f32
    %22 = vector.broadcast %cst_23 : f32 to vector<16x128xf32>
    %23 = arith.maximumf %21, %22 : vector<16x128xf32>
    %c1_24 = arith.constant 1 : index
    %c0_25 = arith.constant 0 : index
    %24 = vector.load %arg11[%c1_24, %c0_25] : memref<18x128xf32, #tpu.memory_space<vmem>>, vector<16x128xf32>
    tpu.vector_store %arg11[%c1_24, %c0_25], %23 {strides = array<i32>} : memref<18x128xf32, #tpu.memory_space<vmem>>, vector<16x128xf32>,
    %c0_26 = arith.constant 0 : index
    %c0_27 = arith.constant 0 : index
    %25 = vector.load %arg11[%c0_26, %c0_27] : memref<18x128xf32, #tpu.memory_space<vmem>>, vector<16x128xf32>
    %c1_28 = arith.constant 1 : index
    %c0_29 = arith.constant 0 : index
    %26 = vector.load %arg11[%c1_28, %c0_29] : memref<18x128xf32, #tpu.memory_space<vmem>>, vector<16x128xf32>
    %c2_30 = arith.constant 2 : index
    %c0_31 = arith.constant 0 : index
    %27 = vector.load %arg11[%c2_30, %c0_31] : memref<18x128xf32, #tpu.memory_space<vmem>>, vector<16x128xf32>
    %28 = tpu.concatenate %25, %26, %27 in 1 : vector<16x128xf32>, vector<16x128xf32>, vector<16x128xf32> -> vector<16x384xf32>
    %29 = arith.truncf %28 : vector<16x384xf32> to vector<16x384xbf16>
    %c0_32 = arith.constant 0 : index
    %c0_33 = arith.constant 0 : index
    %30 = vector.load %arg3[%c0_32, %c0_33] : memref<384x128xbf16, #tpu.memory_space<vmem>>, vector<384x128xbf16>
    %cst_34 = arith.constant dense<0.000000e+00> : vector<16x128xf32>
    %31 = tpu.matmul %29, %30, %cst_34 {dimension_numbers = #tpu.dot_dimension_numbers<[1], [0], [0], [1], [0, 0, 1, 1], [], []>} : vector<16x384xbf16>, vector<384x128xbf16>, vector<16x128xf32> -> vector<16x128xf32>
    %c0_35 = arith.constant 0 : index
    %c0_36 = arith.constant 0 : index
    %32 = vector.load %arg7[%c0_35, %c0_36] : memref<2x128xf32, #tpu.memory_space<vmem>>, vector<1x128xf32>
    %33 = vector.broadcast %32 : vector<1x128xf32> to vector<16x128xf32>
    %34 = arith.mulf %31, %33 : vector<16x128xf32>
    %c1_37 = arith.constant 1 : index
    %c0_38 = arith.constant 0 : index
    %35 = vector.load %arg7[%c1_37, %c0_38] : memref<2x128xf32, #tpu.memory_space<vmem>>, vector<1x128xf32>
    %36 = vector.broadcast %35 : vector<1x128xf32> to vector<16x128xf32>
    %37 = arith.addf %34, %36 : vector<16x128xf32>
    %cst_39 = arith.constant 0.000000e+00 : f32
    %38 = vector.broadcast %cst_39 : f32 to vector<16x128xf32>
    %39 = arith.maximumf %37, %38 : vector<16x128xf32>
    %c0_40 = arith.constant 0 : index
    %c0_41 = arith.constant 0 : index
    %40 = vector.load %arg12[%c0_40, %c0_41] : memref<17x128xf32, #tpu.memory_space<vmem>>, vector<16x128xf32>
    tpu.vector_store %arg12[%c0_40, %c0_41], %39 {strides = array<i32>} : memref<17x128xf32, #tpu.memory_space<vmem>>, vector<16x128xf32>,
    %c0_42 = arith.constant 0 : index
    %c0_43 = arith.constant 0 : index
    %41 = vector.load %arg12[%c0_42, %c0_43] : memref<17x128xf32, #tpu.memory_space<vmem>>, vector<16x128xf32>
    %c1_44 = arith.constant 1 : index
    %c0_45 = arith.constant 0 : index
    %42 = vector.load %arg12[%c1_44, %c0_45] : memref<17x128xf32, #tpu.memory_space<vmem>>, vector<16x128xf32>
    %43 = tpu.concatenate %41, %42 in 1 : vector<16x128xf32>, vector<16x128xf32> -> vector<16x256xf32>
    %44 = arith.truncf %39 : vector<16x128xf32> to vector<16x128xbf16>
    %c0_46 = arith.constant 0 : index
    %c0_47 = arith.constant 0 : index
    %45 = vector.load %arg4[%c0_46, %c0_47] : memref<128x128xbf16, #tpu.memory_space<vmem>>, vector<128x128xbf16>
    %cst_48 = arith.constant dense<0.000000e+00> : vector<16x128xf32>
    %46 = tpu.matmul %44, %45, %cst_48 {dimension_numbers = #tpu.dot_dimension_numbers<[1], [0], [0], [1], [0, 0, 1, 1], [], []>} : vector<16x128xbf16>, vector<128x128xbf16>, vector<16x128xf32> -> vector<16x128xf32>
    %47 = arith.truncf %43 : vector<16x256xf32> to vector<16x256xbf16>
    %c0_49 = arith.constant 0 : index
    %c0_50 = arith.constant 0 : index
    %48 = vector.load %arg5[%c0_49, %c0_50] : memref<256x128xbf16, #tpu.memory_space<vmem>>, vector<256x128xbf16>
    %cst_51 = arith.constant dense<0.000000e+00> : vector<16x128xf32>
    %49 = tpu.matmul %47, %48, %cst_51 {dimension_numbers = #tpu.dot_dimension_numbers<[1], [0], [0], [1], [0, 0, 1, 1], [], []>} : vector<16x256xbf16>, vector<256x128xbf16>, vector<16x128xf32> -> vector<16x128xf32>
    %c0_52 = arith.constant 0 : index
    %c0_53 = arith.constant 0 : index
    %50 = vector.load %arg8[%c0_52, %c0_53] : memref<2x128xf32, #tpu.memory_space<vmem>>, vector<1x128xf32>
    %c1_54 = arith.constant 1 : index
    %c0_55 = arith.constant 0 : index
    %51 = vector.load %arg8[%c1_54, %c0_55] : memref<2x128xf32, #tpu.memory_space<vmem>>, vector<1x128xf32>
    %52 = vector.broadcast %50 : vector<1x128xf32> to vector<16x128xf32>
    %53 = arith.mulf %46, %52 : vector<16x128xf32>
    %54 = vector.broadcast %51 : vector<1x128xf32> to vector<16x128xf32>
    %55 = arith.addf %53, %54 : vector<16x128xf32>
    %cst_56 = arith.constant 0.000000e+00 : f32
    %56 = vector.broadcast %cst_56 : f32 to vector<16x128xf32>
    %57 = arith.maximumf %55, %56 : vector<16x128xf32>
    %c0_57 = arith.constant 0 : index
    %c0_58 = arith.constant 0 : index
    %c0_59 = arith.constant 0 : index
    %c0_60 = arith.constant 0 : index
    %58 = vector.load %arg9[%c0_57, %c0_58, %c0_59, %c0_60] : memref<1x2x16x128xf32, #tpu.memory_space<vmem>>, vector<1x1x16x128xf32>
    %59 = vector.shape_cast %58 : vector<1x1x16x128xf32> to vector<16x128xf32>
    %60 = vector.shape_cast %57 : vector<16x128xf32> to vector<1x1x16x128xf32>
    tpu.vector_store %arg9[%c0_57, %c0_58, %c0_59, %c0_60], %60 {strides = array<i32>} : memref<1x2x16x128xf32, #tpu.memory_space<vmem>>, vector<1x1x16x128xf32>,
    %61 = vector.broadcast %50 : vector<1x128xf32> to vector<16x128xf32>
    %62 = arith.mulf %49, %61 : vector<16x128xf32>
    %63 = vector.broadcast %51 : vector<1x128xf32> to vector<16x128xf32>
    %64 = arith.addf %62, %63 : vector<16x128xf32>
    %cst_61 = arith.constant 0.000000e+00 : f32
    %65 = vector.broadcast %cst_61 : f32 to vector<16x128xf32>
    %66 = arith.maximumf %64, %65 : vector<16x128xf32>
    %c0_62 = arith.constant 0 : index
    %c1_63 = arith.constant 1 : index
    %c0_64 = arith.constant 0 : index
    %c0_65 = arith.constant 0 : index
    %67 = vector.load %arg9[%c0_62, %c1_63, %c0_64, %c0_65] : memref<1x2x16x128xf32, #tpu.memory_space<vmem>>, vector<1x1x16x128xf32>
    %68 = vector.shape_cast %67 : vector<1x1x16x128xf32> to vector<16x128xf32>
    %69 = vector.shape_cast %66 : vector<16x128xf32> to vector<1x1x16x128xf32>
    tpu.vector_store %arg9[%c0_62, %c1_63, %c0_64, %c0_65], %69 {strides = array<i32>} : memref<1x2x16x128xf32, #tpu.memory_space<vmem>>, vector<1x1x16x128xf32>,
    return
  }
  func.func @transform_0(%arg0: i32) -> (i32, i32, i32) {
    %c0_i32 = arith.constant 0 : i32
    %c0_i32_0 = arith.constant 0 : i32
    %c0_i32_1 = arith.constant 0 : i32
    return %arg0, %c0_i32, %c0_i32_0 : i32, i32, i32
  }
  func.func @transform_1(%arg0: i32) -> (i32, i32) {
    %c0_i32 = arith.constant 0 : i32
    %c0_i32_0 = arith.constant 0 : i32
    %c0_i32_1 = arith.constant 0 : i32
    return %c0_i32, %c0_i32_0 : i32, i32
  }
  func.func @transform_2(%arg0: i32) -> (i32, i32) {
    %c0_i32 = arith.constant 0 : i32
    %c0_i32_0 = arith.constant 0 : i32
    %c0_i32_1 = arith.constant 0 : i32
    return %c0_i32, %c0_i32_0 : i32, i32
  }
  func.func @transform_3(%arg0: i32) -> (i32, i32) {
    %c0_i32 = arith.constant 0 : i32
    %c0_i32_0 = arith.constant 0 : i32
    %c0_i32_1 = arith.constant 0 : i32
    return %c0_i32, %c0_i32_0 : i32, i32
  }
  func.func @transform_4(%arg0: i32) -> (i32, i32) {
    %c0_i32 = arith.constant 0 : i32
    %c0_i32_0 = arith.constant 0 : i32
    %c0_i32_1 = arith.constant 0 : i32
    return %c0_i32, %c0_i32_0 : i32, i32
  }
  func.func @transform_5(%arg0: i32) -> (i32, i32) {
    %c0_i32 = arith.constant 0 : i32
    %c0_i32_0 = arith.constant 0 : i32
    %c0_i32_1 = arith.constant 0 : i32
    return %c0_i32, %c0_i32_0 : i32, i32
  }
  func.func @transform_6(%arg0: i32) -> (i32, i32) {
    %c0_i32 = arith.constant 0 : i32
    %c0_i32_0 = arith.constant 0 : i32
    %c0_i32_1 = arith.constant 0 : i32
    return %c0_i32, %c0_i32_0 : i32, i32
  }
  func.func @transform_7(%arg0: i32) -> (i32, i32) {
    %c0_i32 = arith.constant 0 : i32
    %c0_i32_0 = arith.constant 0 : i32
    %c0_i32_1 = arith.constant 0 : i32
    return %c0_i32, %c0_i32_0 : i32, i32
  }
  func.func @transform_8(%arg0: i32) -> (i32, i32, i32, i32) {
    %c0_i32 = arith.constant 0 : i32
    %c0_i32_0 = arith.constant 0 : i32
    %c0_i32_1 = arith.constant 0 : i32
    %c0_i32_2 = arith.constant 0 : i32
    return %arg0, %c0_i32, %c0_i32_0, %c0_i32_1 : i32, i32, i32, i32
  }
}

</mosaic_0001>

<llo_original>
// kernel: tile.37
$region0: #{tile.37}
  #allocation0 [shape = 's32[1]{0}', space=sflag, size = 0x4, scoped, tag = 'scoped memory for tile.37']
  %s0 = inlined_call_operand.vmem [shape: f32[8], index: 0, kind: input, shape index: {}]
  %s1 = inlined_call_operand.vmem [shape: f32[16,8], index: 1, kind: output, shape index: {}]
  // Predicated region
  $region2: #{tile.37} parent=0 // pred_check
    _
  $region3: #{tile.37} parent=0 // pred_check_branch
    %3 = sbr.rel (0) target = $region5
  $region4: #{tile.37} parent=0 // pred_region
    _
  $region5: #{tile.37} parent=0 // pred_fallthru
    _
  %v4 = vld [vmem:[%s0] ss:$0 sm:$0xff]
  %5 = vst [vmem:[%s1] sm:$0xff] %v4
  %s6 = scalar_lea.vmem %s1, 8
  %7 = vst [vmem:[%s6] sm:$0xff] %v4

// kernel: tile.39
$region0: #{tile.39}
  %s0 = inlined_call_operand.vmem [shape: f32[16,8], index: 0, kind: input, shape index: {}]
  %s1 = inlined_call_operand.vmem [shape: f32[1,128], index: 1, kind: output, shape index: {}]
  $region1: #{tile.39} parent=0
    #allocation0 [shape = 'u8[4096]{0}', space=vmem, size = 0x1000, scoped, tag = 'scoped mem for output reshape']
    %v2 = vld [vmem:[%s0] sm:$0x1]
    %vm3 = vcmask 64512
    %4 = vst.msk [vmem:[#allocation0] sm:$0x1] %vm3, %v2
    %s5 = scalar_lea.vmem %s0, 15
    %v6 = vld [vmem:[%s5] sm:$0x1]
    %7 = vrot.lane.b32.xlu0 %v6, 120
    %v8 = vpop.permute.xlu0 %7
    %vm9 = vcmask 1048512
    %10 = vst.msk [vmem:[#allocation0] sm:$0x1] %vm9, %v8
    %s11 = scalar_lea.vmem %s0, 14
    %v12 = vld [vmem:[%s11] sm:$0x1]
    %13 = vrot.lane.b32.xlu0 %v12, 112
    %v14 = vpop.permute.xlu0 %13
    %vm15 = vcmask 982912
    %16 = vst.msk [vmem:[#allocation0] sm:$0x1] %vm15, %v14
    %s17 = scalar_lea.vmem %s0, 13
    %v18 = vld [vmem:[%s17] sm:$0x1]
    %19 = vrot.lane.b32.xlu0 %v18, 104
    %v20 = vpop.permute.xlu0 %19
    %vm21 = vcmask 917312
    %22 = vst.msk [vmem:[#allocation0] sm:$0x1] %vm21, %v20
    %s23 = scalar_lea.vmem %s0, 12
    %v24 = vld [vmem:[%s23] sm:$0x1]
    %25 = vrot.lane.b32.xlu0 %v24, 96
    %v26 = vpop.permute.xlu0 %25
    %vm27 = vcmask 851712
    %28 = vst.msk [vmem:[#allocation0] sm:$0x1] %vm27, %v26
    %s29 = scalar_lea.vmem %s0, 11
    %v30 = vld [vmem:[%s29] sm:$0x1]
    %31 = vrot.lane.b32.xlu0 %v30, 88
    %v32 = vpop.permute.xlu0 %31
    %vm33 = vcmask 786112
    %34 = vst.msk [vmem:[#allocation0] sm:$0x1] %vm33, %v32
    %s35 = scalar_lea.vmem %s0, 10
    %v36 = vld [vmem:[%s35] sm:$0x1]
    %37 = vrot.lane.b32.xlu0 %v36, 80
    %v38 = vpop.permute.xlu0 %37
    %vm39 = vcmask 720512
    %40 = vst.msk [vmem:[#allocation0] sm:$0x1] %vm39, %v38
    %s41 = scalar_lea.vmem %s0, 9
    %v42 = vld [vmem:[%s41] sm:$0x1]
    %43 = vrot.lane.b32.xlu0 %v42, 72
    %v44 = vpop.permute.xlu0 %43
    %vm45 = vcmask 654912
    %46 = vst.msk [vmem:[#allocation0] sm:$0x1] %vm45, %v44
    %s47 = scalar_lea.vmem %s0, 8
    %v48 = vld [vmem:[%s47] sm:$0x1]
    %49 = vrot.lane.b32.xlu0 %v48, 64
    %v50 = vpop.permute.xlu0 %49
    %vm51 = vcmask 589312
    %52 = vst.msk [vmem:[#allocation0] sm:$0x1] %vm51, %v50
    %s53 = scalar_lea.vmem %s0, 7
    %v54 = vld [vmem:[%s53] sm:$0x1]
    %55 = vrot.lane.b32.xlu0 %v54, 56
    %v56 = vpop.permute.xlu0 %55
    %vm57 = vcmask 523712
    %58 = vst.msk [vmem:[#allocation0] sm:$0x1] %vm57, %v56
    %s59 = scalar_lea.vmem %s0, 6
    %v60 = vld [vmem:[%s59] sm:$0x1]
    %61 = vrot.lane.b32.xlu0 %v60, 48
    %v62 = vpop.permute.xlu0 %61
    %vm63 = vcmask 458112
    %64 = vst.msk [vmem:[#allocation0] sm:$0x1] %vm63, %v62
    %s65 = scalar_lea.vmem %s0, 5
    %v66 = vld [vmem:[%s65] sm:$0x1]
    %67 = vrot.lane.b32.xlu0 %v66, 40
    %v68 = vpop.permute.xlu0 %67
    %vm69 = vcmask 392512
    %70 = vst.msk [vmem:[#allocation0] sm:$0x1] %vm69, %v68
    %s71 = scalar_lea.vmem %s0, 4
    %v72 = vld [vmem:[%s71] sm:$0x1]
    %73 = vrot.lane.b32.xlu0 %v72, 32
    %v74 = vpop.permute.xlu0 %73
    %vm75 = vcmask 326912
    %76 = vst.msk [vmem:[#allocation0] sm:$0x1] %vm75, %v74
    %s77 = scalar_lea.vmem %s0, 3
    %v78 = vld [vmem:[%s77] sm:$0x1]
    %79 = vrot.lane.b32.xlu0 %v78, 24
    %v80 = vpop.permute.xlu0 %79
    %vm81 = vcmask 261312
    %82 = vst.msk [vmem:[#allocation0] sm:$0x1] %vm81, %v80
    %s83 = scalar_lea.vmem %s0, 2
    %v84 = vld [vmem:[%s83] sm:$0x1]
    %85 = vrot.lane.b32.xlu0 %v84, 16
    %v86 = vpop.permute.xlu0 %85
    %vm87 = vcmask 195712
    %88 = vst.msk [vmem:[#allocation0] sm:$0x1] %vm87, %v86
    %s89 = scalar_lea.vmem %s0, 1
    %v90 = vld [vmem:[%s89] sm:$0x1]
    %91 = vrot.lane.b32.xlu0 %v90, 8
    %v92 = vpop.permute.xlu0 %91
    %vm93 = vcmask 130112
    %94 = vst.msk [vmem:[#allocation0] sm:$0x1] %vm93, %v92
    %s96 = sshllo.u32 0, 1
    %v98 = vld [vmem:[#allocation0] sm:%s96]
    %s99 = sshllo.u32 0, 1
    %100 = vst [vmem:[%s1] sm:%s99] %v98

// kernel: tile.57
$region0: #{tile.57}
  #allocation0 [shape = 's32[1]{0}', space=sflag, size = 0x4, scoped, tag = 'scoped memory for tile.57']
  %s0 = inlined_call_operand.vmem [shape: f32[4], index: 0, kind: input, shape index: {}]
  %s1 = inlined_call_operand.vmem [shape: f32[32,4], index: 1, kind: output, shape index: {}]
  // Predicated region
  $region2: #{tile.57} parent=0 // pred_check
    _
  $region3: #{tile.57} parent=0 // pred_check_branch
    %3 = sbr.rel (0) target = $region5
  $region4: #{tile.57} parent=0 // pred_region
    _
  $region5: #{tile.57} parent=0 // pred_fallthru
    _
  %v4 = vld [vmem:[%s0] ss:$0 sm:$0xff]
  %5 = vst [vmem:[%s1] sm:$0xff] %v4
  %s6 = scalar_lea.vmem %s1, 8
  %7 = vst [vmem:[%s6] sm:$0xff] %v4
  %s8 = scalar_lea.vmem %s1, 16
  %9 = vst [vmem:[%s8] sm:$0xff] %v4
  %s10 = scalar_lea.vmem %s1, 24
  %11 = vst [vmem:[%s10] sm:$0xff] %v4

// kernel: tile.59
$region0: #{tile.59}
  %s0 = inlined_call_operand.vmem [shape: f32[32,4], index: 0, kind: input, shape index: {}]
  %s1 = inlined_call_operand.vmem [shape: f32[1,128], index: 1, kind: output, shape index: {}]
  $region1: #{tile.59} parent=0
    #allocation0 [shape = 'u8[4096]{0}', space=vmem, size = 0x1000, scoped, tag = 'scoped mem for output reshape']
    %v2 = vld [vmem:[%s0] sm:$0x1]
    %vm3 = vcmask 31744
    %4 = vst.msk [vmem:[#allocation0] sm:$0x1] %vm3, %v2
    %s5 = scalar_lea.vmem %s0, 31
    %v6 = vld [vmem:[%s5] sm:$0x1]
    %7 = vrot.lane.b32.xlu0 %v6, 124
    %v8 = vpop.permute.xlu0 %7
    %vm9 = vcmask 1048544
    %10 = vst.msk [vmem:[#allocation0] sm:$0x1] %vm9, %v8
    %s11 = scalar_lea.vmem %s0, 30
    %v12 = vld [vmem:[%s11] sm:$0x1]
    %13 = vrot.lane.b32.xlu0 %v12, 120
    %v14 = vpop.permute.xlu0 %13
    %vm15 = vcmask 1015744
    %16 = vst.msk [vmem:[#allocation0] sm:$0x1] %vm15, %v14
    %s17 = scalar_lea.vmem %s0, 29
    %v18 = vld [vmem:[%s17] sm:$0x1]
    %19 = vrot.lane.b32.xlu0 %v18, 116
    %v20 = vpop.permute.xlu0 %19
    %vm21 = vcmask 982944
    %22 = vst.msk [vmem:[#allocation0] sm:$0x1] %vm21, %v20
    %s23 = scalar_lea.vmem %s0, 28
    %v24 = vld [vmem:[%s23] sm:$0x1]
    %25 = vrot.lane.b32.xlu0 %v24, 112
    %v26 = vpop.permute.xlu0 %25
    %vm27 = vcmask 950144
    %28 = vst.msk [vmem:[#allocation0] sm:$0x1] %vm27, %v26
    %s29 = scalar_lea.vmem %s0, 27
    %v30 = vld [vmem:[%s29] sm:$0x1]
    %31 = vrot.lane.b32.xlu0 %v30, 108
    %v32 = vpop.permute.xlu0 %31
    %vm33 = vcmask 917344
    %34 = vst.msk [vmem:[#allocation0] sm:$0x1] %vm33, %v32
    %s35 = scalar_lea.vmem %s0, 26
    %v36 = vld [vmem:[%s35] sm:$0x1]
    %37 = vrot.lane.b32.xlu0 %v36, 104
    %v38 = vpop.permute.xlu0 %37
    %vm39 = vcmask 884544
    %40 = vst.msk [vmem:[#allocation0] sm:$0x1] %vm39, %v38
    %s41 = scalar_lea.vmem %s0, 25
    %v42 = vld [vmem:[%s41] sm:$0x1]
    %43 = vrot.lane.b32.xlu0 %v42, 100
    %v44 = vpop.permute.xlu0 %43
    %vm45 = vcmask 851744
    %46 = vst.msk [vmem:[#allocation0] sm:$0x1] %vm45, %v44
    %s47 = scalar_lea.vmem %s0, 24
    %v48 = vld [vmem:[%s47] sm:$0x1]
    %49 = vrot.lane.b32.xlu0 %v48, 96
    %v50 = vpop.permute.xlu0 %49
    %vm51 = vcmask 818944
    %52 = vst.msk [vmem:[#allocation0] sm:$0x1] %vm51, %v50
    %s53 = scalar_lea.vmem %s0, 23
    %v54 = vld [vmem:[%s53] sm:$0x1]
    %55 = vrot.lane.b32.xlu0 %v54, 92
    %v56 = vpop.permute.xlu0 %55
    %vm57 = vcmask 786144
    %58 = vst.msk [vmem:[#allocation0] sm:$0x1] %vm57, %v56
    %s59 = scalar_lea.vmem %s0, 22
    %v60 = vld [vmem:[%s59] sm:$0x1]
    %61 = vrot.lane.b32.xlu0 %v60, 88
    %v62 = vpop.permute.xlu0 %61
    %vm63 = vcmask 753344
    %64 = vst.msk [vmem:[#allocation0] sm:$0x1] %vm63, %v62
    %s65 = scalar_lea.vmem %s0, 21
    %v66 = vld [vmem:[%s65] sm:$0x1]
    %67 = vrot.lane.b32.xlu0 %v66, 84
    %v68 = vpop.permute.xlu0 %67
    %vm69 = vcmask 720544
    %70 = vst.msk [vmem:[#allocation0] sm:$0x1] %vm69, %v68
    %s71 = scalar_lea.vmem %s0, 20
    %v72 = vld [vmem:[%s71] sm:$0x1]
    %73 = vrot.lane.b32.xlu0 %v72, 80
    %v74 = vpop.permute.xlu0 %73
    %vm75 = vcmask 687744
    %76 = vst.msk [vmem:[#allocation0] sm:$0x1] %vm75, %v74
    %s77 = scalar_lea.vmem %s0, 19
    %v78 = vld [vmem:[%s77] sm:$0x1]
    %79 = vrot.lane.b32.xlu0 %v78, 76
    %v80 = vpop.permute.xlu0 %79
    %vm81 = vcmask 654944
    %82 = vst.msk [vmem:[#allocation0] sm:$0x1] %vm81, %v80
    %s83 = scalar_lea.vmem %s0, 18
    %v84 = vld [vmem:[%s83] sm:$0x1]
    %85 = vrot.lane.b32.xlu0 %v84, 72
    %v86 = vpop.permute.xlu0 %85
    %vm87 = vcmask 622144
    %88 = vst.msk [vmem:[#allocation0] sm:$0x1] %vm87, %v86
    %s89 = scalar_lea.vmem %s0, 17
    %v90 = vld [vmem:[%s89] sm:$0x1]
    %91 = vrot.lane.b32.xlu0 %v90, 68
    %v92 = vpop.permute.xlu0 %91
    %vm93 = vcmask 589344
    %94 = vst.msk [vmem:[#allocation0] sm:$0x1] %vm93, %v92
    %s95 = scalar_lea.vmem %s0, 16
    %v96 = vld [vmem:[%s95] sm:$0x1]
    %97 = vrot.lane.b32.xlu0 %v96, 64
    %v98 = vpop.permute.xlu0 %97
    %vm99 = vcmask 556544
    %100 = vst.msk [vmem:[#allocation0] sm:$0x1] %vm99, %v98
    %s101 = scalar_lea.vmem %s0, 15
    %v102 = vld [vmem:[%s101] sm:$0x1]
    %103 = vrot.lane.b32.xlu0 %v102, 60
    %v104 = vpop.permute.xlu0 %103
    %vm105 = vcmask 523744
    %106 = vst.msk [vmem:[#allocation0] sm:$0x1] %vm105, %v104
    %s107 = scalar_lea.vmem %s0, 14
    %v108 = vld [vmem:[%s107] sm:$0x1]
    %109 = vrot.lane.b32.xlu0 %v108, 56
    %v110 = vpop.permute.xlu0 %109
    %vm111 = vcmask 490944
    %112 = vst.msk [vmem:[#allocation0] sm:$0x1] %vm111, %v110
    %s113 = scalar_lea.vmem %s0, 13
    %v114 = vld [vmem:[%s113] sm:$0x1]
    %115 = vrot.lane.b32.xlu0 %v114, 52
    %v116 = vpop.permute.xlu0 %115
    %vm117 = vcmask 458144
    %118 = vst.msk [vmem:[#allocation0] sm:$0x1] %vm117, %v116
    %s119 = scalar_lea.vmem %s0, 12
    %v120 = vld [vmem:[%s119] sm:$0x1]
    %121 = vrot.lane.b32.xlu0 %v120, 48
    %v122 = vpop.permute.xlu0 %121
    %vm123 = vcmask 425344
    %124 = vst.msk [vmem:[#allocation0] sm:$0x1] %vm123, %v122
    %s125 = scalar_lea.vmem %s0, 11
    %v126 = vld [vmem:[%s125] sm:$0x1]
    %127 = vrot.lane.b32.xlu0 %v126, 44
    %v128 = vpop.permute.xlu0 %127
    %vm129 = vcmask 392544
    %130 = vst.msk [vmem:[#allocation0] sm:$0x1] %vm129, %v128
    %s131 = scalar_lea.vmem %s0, 10
    %v132 = vld [vmem:[%s131] sm:$0x1]
    %133 = vrot.lane.b32.xlu0 %v132, 40
    %v134 = vpop.permute.xlu0 %133
    %vm135 = vcmask 359744
    %136 = vst.msk [vmem:[#allocation0] sm:$0x1] %vm135, %v134
    %s137 = scalar_lea.vmem %s0, 9
    %v138 = vld [vmem:[%s137] sm:$0x1]
    %139 = vrot.lane.b32.xlu0 %v138, 36
    %v140 = vpop.permute.xlu0 %139
    %vm141 = vcmask 326944
    %142 = vst.msk [vmem:[#allocation0] sm:$0x1] %vm141, %v140
    %s143 = scalar_lea.vmem %s0, 8
    %v144 = vld [vmem:[%s143] sm:$0x1]
    %145 = vrot.lane.b32.xlu0 %v144, 32
    %v146 = vpop.permute.xlu0 %145
    %vm147 = vcmask 294144
    %148 = vst.msk [vmem:[#allocation0] sm:$0x1] %vm147, %v146
    %s149 = scalar_lea.vmem %s0, 7
    %v150 = vld [vmem:[%s149] sm:$0x1]
    %151 = vrot.lane.b32.xlu0 %v150, 28
    %v152 = vpop.permute.xlu0 %151
    %vm153 = vcmask 261344
    %154 = vst.msk [vmem:[#allocation0] sm:$0x1] %vm153, %v152
    %s155 = scalar_lea.vmem %s0, 6
    %v156 = vld [vmem:[%s155] sm:$0x1]
    %157 = vrot.lane.b32.xlu0 %v156, 24
    %v158 = vpop.permute.xlu0 %157
    %vm159 = vcmask 228544
    %160 = vst.msk [vmem:[#allocation0] sm:$0x1] %vm159, %v158
    %s161 = scalar_lea.vmem %s0, 5
    %v162 = vld [vmem:[%s161] sm:$0x1]
    %163 = vrot.lane.b32.xlu0 %v162, 20
    %v164 = vpop.permute.xlu0 %163
    %vm165 = vcmask 195744
    %166 = vst.msk [vmem:[#allocation0] sm:$0x1] %vm165, %v164
    %s167 = scalar_lea.vmem %s0, 4
    %v168 = vld [vmem:[%s167] sm:$0x1]
    %169 = vrot.lane.b32.xlu0 %v168, 16
    %v170 = vpop.permute.xlu0 %169
    %vm171 = vcmask 162944
    %172 = vst.msk [vmem:[#allocation0] sm:$0x1] %vm171, %v170
    %s173 = scalar_lea.vmem %s0, 3
    %v174 = vld [vmem:[%s173] sm:$0x1]
    %175 = vrot.lane.b32.xlu0 %v174, 12
    %v176 = vpop.permute.xlu0 %175
    %vm177 = vcmask 130144
    %178 = vst.msk [vmem:[#allocation0] sm:$0x1] %vm177, %v176
    %s179 = scalar_lea.vmem %s0, 2
    %v180 = vld [vmem:[%s179] sm:$0x1]
    %181 = vrot.lane.b32.xlu0 %v180, 8
    %v182 = vpop.permute.xlu0 %181
    %vm183 = vcmask 97344
    %184 = vst.msk [vmem:[#allocation0] sm:$0x1] %vm183, %v182
    %s185 = scalar_lea.vmem %s0, 1
    %v186 = vld [vmem:[%s185] sm:$0x1]
    %187 = vrot.lane.b32.xlu0 %v186, 4
    %v188 = vpop.permute.xlu0 %187
    %vm189 = vcmask 64544
    %190 = vst.msk [vmem:[#allocation0] sm:$0x1] %vm189, %v188
    %s192 = sshllo.u32 0, 1
    %v194 = vld [vmem:[#allocation0] sm:%s192]
    %s195 = sshllo.u32 0, 1
    %196 = vst [vmem:[%s1] sm:%s195] %v194

// kernel: decoder_block_forward.1
$region0: #{decoder_block_forward.1}
  #allocation0 [shape = 'u32[]', space=smem, size = 0x4, offset = 0x4, fixed_abs, tag = 'smem constant byte address 0x4 - core index']
  #allocation1 [shape = 'u32[144,128]{1,0:T(1,128)}', space=vmem, size = 0x12000, scoped, tag = 'internal scratch']
  #allocation2 [shape = 'f32[18,64]{1,0:T(8,128)}', space=vmem, size = 0x3000, scoped, tag = 'scratch operand']
  #allocation3 [shape = 'f32[18,128]{1,0:T(8,128)}', space=vmem, size = 0x3000, scoped, tag = 'scratch operand']
  #allocation4 [shape = 'f32[17,128]{1,0:T(8,128)}', space=vmem, size = 0x3000, scoped, tag = 'scratch operand']
  %s0 = inlined_call_operand.vmem [shape: f32[2,16,64], index: 0, kind: input, shape index: {}]
  %s1 = inlined_call_operand.vmem [shape: bf16[192,128], index: 1, kind: input, shape index: {}]
  %s2 = inlined_call_operand.vmem [shape: bf16[384,128], index: 2, kind: input, shape index: {}]
  %s3 = inlined_call_operand.vmem [shape: bf16[128,128], index: 3, kind: input, shape index: {}]
  %s4 = inlined_call_operand.vmem [shape: bf16[256,128], index: 4, kind: input, shape index: {}]
  %s5 = inlined_call_operand.vmem [shape: f32[2,128], index: 5, kind: input, shape index: {}]
  %s6 = inlined_call_operand.vmem [shape: f32[2,128], index: 6, kind: input, shape index: {}]
  %s7 = inlined_call_operand.vmem [shape: f32[2,128], index: 7, kind: input, shape index: {}]
  %s8 = inlined_call_operand.vmem [shape: f32[2,2,16,128], index: 8, kind: output, shape index: {}]
  %s9 = sld [smem:[#allocation0]]
  $region65: #{decoder_block_forward.1} parent=0
    _
  %s11 = ssub.s32 1, %s9
  %s12 = scalar_select 0, %s11, %s9
  loop: start=0, step=1, limit=4
  $region2: #{decoder_block_forward.1} parent=0 // loop_pre_header
    _
  $region3: #{decoder_block_forward.1} parent=0 // loop_header
    %s14 = sphi 0, %s18
    %p15 = scmp.ge.s32.totalorder %s14, 4
    %s24 = sphi 0, %s26
    %s27 = sphi 0, %s24
    %s28 = sphi 0, %s27
    %s44 = sphi 0, %s28
    %s48 = sphi 0, %s48
    %s50 = sphi 0, %s48
    %s51 = sphi 0, %s50
    %s65 = sphi 0, %s51
    %s69 = sphi 0, %s69
    %s71 = sphi 0, %s69
    %s72 = sphi 0, %s71
    %s86 = sphi 0, %s72
    %s90 = sphi 0, %s90
    %s92 = sphi 0, %s90
    %s93 = sphi 0, %s92
    %s107 = sphi 0, %s93
    %s111 = sphi 0, %s111
    %s113 = sphi 0, %s111
    %s114 = sphi 0, %s113
    %s128 = sphi 0, %s114
    %s132 = sphi 0, %s132
    %s134 = sphi 0, %s132
    %s135 = sphi 0, %s134
    %s149 = sphi 0, %s135
    %s153 = sphi 0, %s153
    %s155 = sphi 0, %s153
    %s156 = sphi 0, %s155
    %s170 = sphi 0, %s156
    %s174 = sphi 0, %s174
    %s176 = sphi 0, %s174
    %s177 = sphi 0, %s176
    %s191 = sphi 0, %s177
    %s197 = sphi 0, %s199
    %s200 = sphi 0, %s197
    %s201 = sphi 0, %s200
    %s217 = sphi 0, %s201
  $region4: #{decoder_block_forward.1} parent=0 // loop_header_branch
    %17 = sbr.rel (%p15) target = $region8
  $region5: #{decoder_block_forward.1} parent=0 // loop_body
    %s19 = ssub.s32 %s14, 1
    %s20 = ssub.s32 %s14, 2
    %s21 = sadd.s32 %s14, 1
    %s22 = ssub.s32 %s14, %s21
    %p23 = scmp.eq.s32.totalorder %s22, 0
    %s25 = sadd.s32 %s24, 1
    %s26 = scalar_select %p23, %s24, %s25
    %p29 = pneg %p23
    %p30 = scmp.eq.s32.totalorder %s14, 1
    %p31 = por %p29, %p30
    %p32 = scmp.ne.s32.totalorder %s24, %s27
    %p33 = scmp.eq.s32.totalorder %s14, 0
    %p34 = por %p32, %p33
    %p35 = scmp.ne.s32.totalorder %s24, %s27
    %p36 = scmp.eq.s32.totalorder %s19, 1
    %p37 = por %p35, %p36
    %p38 = scmp.ne.s32.totalorder %s27, %s28
    %p39 = scmp.eq.s32.totalorder %s19, 0
    %p40 = por %p38, %p39
    %p41 = scmp.ne.s32.totalorder %s27, %s28
    %p42 = scmp.eq.s32.totalorder %s20, 1
    %p43 = por %p41, %p42
    %p45 = scmp.ne.s32.totalorder %s28, %s44
    %p46 = scmp.eq.s32.totalorder %s20, 0
    %p47 = por %p45, %p46
    %s49 = sadd.s32 %s48, 1
    %p52 = scmp.eq.s32.totalorder %s14, 1
    %p53 = scmp.ne.s32.totalorder %s48, %s50
    %p54 = scmp.eq.s32.totalorder %s14, 0
    %p55 = por %p53, %p54
    %p56 = scmp.ne.s32.totalorder %s48, %s50
    %p57 = scmp.eq.s32.totalorder %s19, 1
    %p58 = por %p56, %p57
    %p59 = scmp.ne.s32.totalorder %s50, %s51
    %p60 = scmp.eq.s32.totalorder %s19, 0
    %p61 = por %p59, %p60
    %p62 = scmp.ne.s32.totalorder %s50, %s51
    %p63 = scmp.eq.s32.totalorder %s20, 1
    %p64 = por %p62, %p63
    %p66 = scmp.ne.s32.totalorder %s51, %s65
    %p67 = scmp.eq.s32.totalorder %s20, 0
    %p68 = por %p66, %p67
    %s70 = sadd.s32 %s69, 1
    %p73 = scmp.eq.s32.totalorder %s14, 1
    %p74 = scmp.ne.s32.totalorder %s69, %s71
    %p75 = scmp.eq.s32.totalorder %s14, 0
    %p76 = por %p74, %p75
    %p77 = scmp.ne.s32.totalorder %s69, %s71
    %p78 = scmp.eq.s32.totalorder %s19, 1
    %p79 = por %p77, %p78
    %p80 = scmp.ne.s32.totalorder %s71, %s72
    %p81 = scmp.eq.s32.totalorder %s19, 0
    %p82 = por %p80, %p81
    %p83 = scmp.ne.s32.totalorder %s71, %s72
    %p84 = scmp.eq.s32.totalorder %s20, 1
    %p85 = por %p83, %p84
    %p87 = scmp.ne.s32.totalorder %s72, %s86
    %p88 = scmp.eq.s32.totalorder %s20, 0
    %p89 = por %p87, %p88
    %s91 = sadd.s32 %s90, 1
    %p94 = scmp.eq.s32.totalorder %s14, 1
    %p95 = scmp.ne.s32.totalorder %s90, %s92
    %p96 = scmp.eq.s32.totalorder %s14, 0
    %p97 = por %p95, %p96
    %p98 = scmp.ne.s32.totalorder %s90, %s92
    %p99 = scmp.eq.s32.totalorder %s19, 1
    %p100 = por %p98, %p99
    %p101 = scmp.ne.s32.totalorder %s92, %s93
    %p102 = scmp.eq.s32.totalorder %s19, 0
    %p103 = por %p101, %p102
    %p104 = scmp.ne.s32.totalorder %s92, %s93
    %p105 = scmp.eq.s32.totalorder %s20, 1
    %p106 = por %p104, %p105
    %p108 = scmp.ne.s32.totalorder %s93, %s107
    %p109 = scmp.eq.s32.totalorder %s20, 0
    %p110 = por %p108, %p109
    %s112 = sadd.s32 %s111, 1
    %p115 = scmp.eq.s32.totalorder %s14, 1
    %p116 = scmp.ne.s32.totalorder %s111, %s113
    %p117 = scmp.eq.s32.totalorder %s14, 0
    %p118 = por %p116, %p117
    %p119 = scmp.ne.s32.totalorder %s111, %s113
    %p120 = scmp.eq.s32.totalorder %s19, 1
    %p121 = por %p119, %p120
    %p122 = scmp.ne.s32.totalorder %s113, %s114
    %p123 = scmp.eq.s32.totalorder %s19, 0
    %p124 = por %p122, %p123
    %p125 = scmp.ne.s32.totalorder %s113, %s114
    %p126 = scmp.eq.s32.totalorder %s20, 1
    %p127 = por %p125, %p126
    %p129 = scmp.ne.s32.totalorder %s114, %s128
    %p130 = scmp.eq.s32.totalorder %s20, 0
    %p131 = por %p129, %p130
    %s133 = sadd.s32 %s132, 1
    %p136 = scmp.eq.s32.totalorder %s14, 1
    %p137 = scmp.ne.s32.totalorder %s132, %s134
    %p138 = scmp.eq.s32.totalorder %s14, 0
    %p139 = por %p137, %p138
    %p140 = scmp.ne.s32.totalorder %s132, %s134
    %p141 = scmp.eq.s32.totalorder %s19, 1
    %p142 = por %p140, %p141
    %p143 = scmp.ne.s32.totalorder %s134, %s135
    %p144 = scmp.eq.s32.totalorder %s19, 0
    %p145 = por %p143, %p144
    %p146 = scmp.ne.s32.totalorder %s134, %s135
    %p147 = scmp.eq.s32.totalorder %s20, 1
    %p148 = por %p146, %p147
    %p150 = scmp.ne.s32.totalorder %s135, %s149
    %p151 = scmp.eq.s32.totalorder %s20, 0
    %p152 = por %p150, %p151
    %s154 = sadd.s32 %s153, 1
    %p157 = scmp.eq.s32.totalorder %s14, 1
    %p158 = scmp.ne.s32.totalorder %s153, %s155
    %p159 = scmp.eq.s32.totalorder %s14, 0
    %p160 = por %p158, %p159
    %p161 = scmp.ne.s32.totalorder %s153, %s155
    %p162 = scmp.eq.s32.totalorder %s19, 1
    %p163 = por %p161, %p162
    %p164 = scmp.ne.s32.totalorder %s155, %s156
    %p165 = scmp.eq.s32.totalorder %s19, 0
    %p166 = por %p164, %p165
    %p167 = scmp.ne.s32.totalorder %s155, %s156
    %p168 = scmp.eq.s32.totalorder %s20, 1
    %p169 = por %p167, %p168
    %p171 = scmp.ne.s32.totalorder %s156, %s170
    %p172 = scmp.eq.s32.totalorder %s20, 0
    %p173 = por %p171, %p172
    %s175 = sadd.s32 %s174, 1
    %p178 = scmp.eq.s32.totalorder %s14, 1
    %p179 = scmp.ne.s32.totalorder %s174, %s176
    %p180 = scmp.eq.s32.totalorder %s14, 0
    %p181 = por %p179, %p180
    %p182 = scmp.ne.s32.totalorder %s174, %s176
    %p183 = scmp.eq.s32.totalorder %s19, 1
    %p184 = por %p182, %p183
    %p185 = scmp.ne.s32.totalorder %s176, %s177
    %p186 = scmp.eq.s32.totalorder %s19, 0
    %p187 = por %p185, %p186
    %p188 = scmp.ne.s32.totalorder %s176, %s177
    %p189 = scmp.eq.s32.totalorder %s20, 1
    %p190 = por %p188, %p189
    %p192 = scmp.ne.s32.totalorder %s177, %s191
    %p193 = scmp.eq.s32.totalorder %s20, 0
    %p194 = por %p192, %p193
    %s195 = ssub.s32 %s14, %s21
    %p196 = scmp.eq.s32.totalorder %s195, 0
    %s198 = sadd.s32 %s197, 1
    %s199 = scalar_select %p196, %s197, %s198
    %p202 = pneg %p196
    %p203 = scmp.eq.s32.totalorder %s14, 1
    %p204 = por %p202, %p203
    %p205 = scmp.ne.s32.totalorder %s197, %s200
    %p206 = scmp.eq.s32.totalorder %s14, 0
    %p207 = por %p205, %p206
    %p208 = scmp.ne.s32.totalorder %s197, %s200
    %p209 = scmp.eq.s32.totalorder %s19, 1
    %p210 = por %p208, %p209
    %p211 = scmp.ne.s32.totalorder %s200, %s201
    %p212 = scmp.eq.s32.totalorder %s19, 0
    %p213 = por %p211, %p212
    %p214 = scmp.ne.s32.totalorder %s200, %s201
    %p215 = scmp.eq.s32.totalorder %s20, 1
    %p216 = por %p214, %p215
    %p218 = scmp.ne.s32.totalorder %s201, %s217
    %p219 = scmp.eq.s32.totalorder %s20, 0
    %p220 = por %p218, %p219
    %p221 = scmp.le.s32.totalorder 1, %s14
    %p222 = scmp.lt.s32.totalorder %s14, 3
    %p223 = pnand %p221, %p222
    %p224 = pneg %p223
    // Predicated region
    $region9: #{decoder_block_forward.1} parent=5 // pred_check
      _
    $region10: #{decoder_block_forward.1} parent=5 // pred_check_branch
      %226 = sbr.rel (%p223) target = $region12
    $region11: #{decoder_block_forward.1} parent=5 // pred_region
      %s227 = ssub.s32 %s14, 1
      // Predicated region
      $region13: #{decoder_block_forward.1} parent=11 // pred_check
        %p228 = pneg %p61
      $region14: #{decoder_block_forward.1} parent=11 // pred_check_branch
        %230 = sbr.rel (%p228) target = $region16
      $region15: #{decoder_block_forward.1} parent=11 // pred_region
        _
      $region16: #{decoder_block_forward.1} parent=11 // pred_fallthru
        _
      // Predicated region
      $region17: #{decoder_block_forward.1} parent=11 // pred_check
        %p231 = pneg %p82
      $region18: #{decoder_block_forward.1} parent=11 // pred_check_branch
        %233 = sbr.rel (%p231) target = $region20
      $region19: #{decoder_block_forward.1} parent=11 // pred_region
        _
      $region20: #{decoder_block_forward.1} parent=11 // pred_fallthru
        _
      // Predicated region
      $region21: #{decoder_block_forward.1} parent=11 // pred_check
        %p234 = pneg %p103
      $region22: #{decoder_block_forward.1} parent=11 // pred_check_branch
        %236 = sbr.rel (%p234) target = $region24
      $region23: #{decoder_block_forward.1} parent=11 // pred_region
        _
      $region24: #{decoder_block_forward.1} parent=11 // pred_fallthru
        _
      // Predicated region
      $region25: #{decoder_block_forward.1} parent=11 // pred_check
        %p237 = pneg %p124
      $region26: #{decoder_block_forward.1} parent=11 // pred_check_branch
        %239 = sbr.rel (%p237) target = $region28
      $region27: #{decoder_block_forward.1} parent=11 // pred_region
        _
      $region28: #{decoder_block_forward.1} parent=11 // pred_fallthru
        _
      // Predicated region
      $region29: #{decoder_block_forward.1} parent=11 // pred_check
        %p240 = pneg %p145
      $region30: #{decoder_block_forward.1} parent=11 // pred_check_branch
        %242 = sbr.rel (%p240) target = $region32
      $region31: #{decoder_block_forward.1} parent=11 // pred_region
        _
      $region32: #{decoder_block_forward.1} parent=11 // pred_fallthru
        _
      // Predicated region
      $region33: #{decoder_block_forward.1} parent=11 // pred_check
        %p243 = pneg %p166
      $region34: #{decoder_block_forward.1} parent=11 // pred_check_branch
        %245 = sbr.rel (%p243) target = $region36
      $region35: #{decoder_block_forward.1} parent=11 // pred_region
        _
      $region36: #{decoder_block_forward.1} parent=11 // pred_fallthru
        _
      // Predicated region
      $region37: #{decoder_block_forward.1} parent=11 // pred_check
        %p246 = pneg %p187
      $region38: #{decoder_block_forward.1} parent=11 // pred_check_branch
        %248 = sbr.rel (%p246) target = $region40
      $region39: #{decoder_block_forward.1} parent=11 // pred_region
        _
      $region40: #{decoder_block_forward.1} parent=11 // pred_fallthru
        _
    $region12: #{decoder_block_forward.1} parent=5 // pred_fallthru
      _
    %p249 = scmp.lt.s32.totalorder %s14, 2
    // Predicated region
    $region41: #{decoder_block_forward.1} parent=5 // pred_check
      %p250 = pneg %p249
    $region42: #{decoder_block_forward.1} parent=5 // pred_check_branch
      %252 = sbr.rel (%p250) target = $region44
    $region43: #{decoder_block_forward.1} parent=5 // pred_region
      // Predicated region
      $region45: #{decoder_block_forward.1} parent=43 // pred_check
        %p253 = pneg %p34
      $region46: #{decoder_block_forward.1} parent=43 // pred_check_branch
        %255 = sbr.rel (%p253) target = $region48
      $region47: #{decoder_block_forward.1} parent=43 // pred_region
        %p256 = scmp.lt.s32.totalorder %s14, 1
        %s257 = scalar_select %p256, %s14, 1
        %s258 = smul.addr %s257, 2
        %s259 = smul.addr %s258, 8
        %s260 = scalar_lea.vmem %s0, %s259
      $region48: #{decoder_block_forward.1} parent=43 // pred_fallthru
        _
    $region44: #{decoder_block_forward.1} parent=5 // pred_fallthru
      _
    %p261 = scmp.le.s32.totalorder 1, %s14
    %p262 = scmp.lt.s32.totalorder %s14, 3
    %p263 = pnand %p261, %p262
    %p264 = pneg %p263
    // Predicated region
    $region49: #{decoder_block_forward.1} parent=5 // pred_check
      _
    $region50: #{decoder_block_forward.1} parent=5 // pred_check_branch
      %266 = sbr.rel (%p263) target = $region52
    $region51: #{decoder_block_forward.1} parent=5 // pred_region
      %s267 = ssub.s32 %s14, 1
      %p268 = scmp.lt.s32.totalorder %s19, 1
      %s269 = scalar_select %p268, %s19, 1
      %s270 = smul.addr %s269, 2
      %s271 = smul.addr %s270, 8
      %s272 = scalar_lea.vmem %s0, %s271
      %p273 = pneg %p40
      %p274 = pneg %p37
      %p275 = pneg %p61
      %p276 = pneg %p58
      %p277 = pneg %p82
      %p278 = pneg %p79
      %p279 = pneg %p103
      %p280 = pneg %p100
      %p281 = pneg %p124
      %p282 = pneg %p121
      %p283 = pneg %p145
      %p284 = pneg %p142
      %p285 = pneg %p166
      %p286 = pneg %p163
      %p287 = pneg %p187
      %p288 = pneg %p184
      %p289 = pneg %p213
      %p290 = pneg %p210
      %p291 = scmp.lt.s32.totalorder %s19, 1
      %s292 = scalar_select %p291, %s19, 1
      %s293 = smul.addr %s292, 4
      %s294 = smul.addr %s293, 8
      %s295 = scalar_lea.vmem %s8, %s294
      %p296 = scmp.lt.s32.totalorder %s19, 1
      %s297 = scalar_select %p296, %s19, 1
      %s298 = smul.addr %s297, 2
      %s299 = smul.addr %s298, 8
      %s300 = scalar_lea.vmem %s0, %s299
      %p301 = scmp.lt.s32.totalorder %s19, 1
      %s302 = scalar_select %p301, %s19, 1
      %s303 = smul.addr %s302, 4
      %s304 = smul.addr %s303, 8
      %s305 = scalar_lea.vmem %s8, %s304
      %vm307 = vcmask 523264
      %308 = vst.msk [vmem:[#allocation2] sm:$0xff] %vm307, 0.0
      %309 = vst.msk [vmem:[#allocation2 + $0x8] sm:$0xff] %vm307, 0.0
      %vm310 = vcmask 517120
      %311 = vst.msk [vmem:[#allocation2 + $0x10] sm:$0x3] %vm310, 0.0
      %312 = vst [vmem:[#allocation3] sm:$0xff] 0.0
      %313 = vst [vmem:[#allocation3 + $0x8] sm:$0xff] 0.0
      %314 = vst [vmem:[#allocation3 + $0x10] sm:$0x3] 0.0
      %315 = vst [vmem:[#allocation4] sm:$0xff] 0.0
      %316 = vst [vmem:[#allocation4 + $0x8] sm:$0xff] 0.0
      %317 = vst [vmem:[#allocation4 + $0x10] sm:$0x1] 0.0
      %v318 = vld [vmem:[%s300] sm:$0xff]
      %v319 = vld [vmem:[%s300 + $0x8] sm:$0xff]
      %320 = vst.msk [vmem:[#allocation2 + $0x1] sm:$0xff] %vm307, %v318
      %321 = vst.msk [vmem:[#allocation2 + $0x9] sm:$0xff] %vm307, %v319
      %v322 = vld [vmem:[#allocation2] sm:$0xff]
      %v323 = vld [vmem:[#allocation2 + $0x8] sm:$0xff]
      %v324 = vld [vmem:[#allocation2 + $0x1] sm:$0xff]
      %v325 = vld [vmem:[#allocation2 + $0x9] sm:$0xff]
      %v326 = vld [vmem:[#allocation2 + $0x2] sm:$0xff]
      %v327 = vld [vmem:[#allocation2 + $0xa] sm:$0xff]
      %330 = vrot.lane.b32.xlu0 %v324, 64
      %v331 = vpop.permute.xlu0 %330
      %332 = vrot.lane.b32.xlu0 %v325, 64
      %v333 = vpop.permute.xlu0 %332
      %v336 = vsel %vm307, %v322, %v331
      %v337 = vsel %vm307, %v323, %v333
      %v338 = vpack.c.bf16 %v337, %v336
      %v339 = vpack.c.bf16 %v327, %v326
      %v340 = vld [vmem:[%s1] sm:$0xf]
      %v341 = vld [vmem:[%s1 + $0x4] sm:$0xf]
      %v342 = vld [vmem:[%s1 + $0x8] sm:$0xf]
      %v343 = vld [vmem:[%s1 + $0xc] sm:$0xf]
      %v344 = vld [vmem:[%s1 + $0x10] sm:$0xf]
      %v345 = vld [vmem:[%s1 + $0x14] sm:$0xf]
      %v346 = vld [vmem:[%s1 + $0x18] sm:$0xf]
      %v347 = vld [vmem:[%s1 + $0x1c] sm:$0xf]
      %v348 = vld [vmem:[%s1 + $0x20] sm:$0xf]
      %v349 = vld [vmem:[%s1 + $0x24] sm:$0xf]
      %v350 = vld [vmem:[%s1 + $0x28] sm:$0xf]
      %v351 = vld [vmem:[%s1 + $0x2c] sm:$0xf]
      %v352 = vld [vmem:[%s1 + $0x30] sm:$0xf]
      %v353 = vld [vmem:[%s1 + $0x34] sm:$0xf]
      %v354 = vld [vmem:[%s1 + $0x38] sm:$0xf]
      %v355 = vld [vmem:[%s1 + $0x3c] sm:$0xf]
      %v356 = vld [vmem:[%s1 + $0x40] sm:$0xf]
      %v357 = vld [vmem:[%s1 + $0x44] sm:$0xf]
      %v358 = vld [vmem:[%s1 + $0x48] sm:$0xf]
      %v359 = vld [vmem:[%s1 + $0x4c] sm:$0xf]
      %v360 = vld [vmem:[%s1 + $0x50] sm:$0xf]
      %v361 = vld [vmem:[%s1 + $0x54] sm:$0xf]
      %v362 = vld [vmem:[%s1 + $0x58] sm:$0xf]
      %v363 = vld [vmem:[%s1 + $0x5c] sm:$0xf]
      %v388 = vunpack.c.l.b16 %v340
      %v389 = vunpack.c.l.b16 %v341
      %v390 = vunpack.c.l.b16 %v342
      %v391 = vunpack.c.l.b16 %v343
      %v392 = vunpack.c.l.b16 %v344
      %v393 = vunpack.c.l.b16 %v345
      %v394 = vunpack.c.l.b16 %v346
      %v395 = vunpack.c.l.b16 %v347
      %v396 = vunpack.c.l.b16 %v348
      %v397 = vunpack.c.l.b16 %v349
      %v398 = vunpack.c.l.b16 %v350
      %v399 = vunpack.c.l.b16 %v351
      %v400 = vunpack.c.l.b16 %v352
      %v401 = vunpack.c.l.b16 %v353
      %v402 = vunpack.c.l.b16 %v354
      %v403 = vunpack.c.l.b16 %v355
      %v404 = vunpack.c.l.b16 %v356
      %v405 = vunpack.c.l.b16 %v357
      %v406 = vunpack.c.l.b16 %v358
      %v407 = vunpack.c.l.b16 %v359
      %v408 = vunpack.c.l.b16 %v360
      %v409 = vunpack.c.l.b16 %v361
      %v410 = vunpack.c.l.b16 %v362
      %v411 = vunpack.c.l.b16 %v363
      %v412 = vpack.c.b16 %v389, %v388
      %v413 = vpack.c.b16 %v391, %v390
      %v414 = vpack.c.b16 %v393, %v392
      %v415 = vpack.c.b16 %v395, %v394
      %v416 = vpack.c.b16 %v397, %v396
      %v417 = vpack.c.b16 %v399, %v398
      %v418 = vpack.c.b16 %v401, %v400
      %v419 = vpack.c.b16 %v403, %v402
      %v420 = vpack.c.b16 %v405, %v404
      %v421 = vpack.c.b16 %v407, %v406
      %v422 = vpack.c.b16 %v409, %v408
      %v423 = vpack.c.b16 %v411, %v410
      %v437 = vsel %vm307, %v339, 0
      %439 = vmatprep.subr.bf16.mxu0 0
      %440 = vmatpush1.bf16.msra.mxu0 %v412
      %441 = vmatprep.subr.bf16.mxu0 0
      %442 = vmatpush1.bf16.msra.mxu0 %v413
      %443 = vmatprep.subr.bf16.mxu0 0
      %444 = vmatpush1.bf16.msra.mxu0 %v414
      %445 = vmatprep.subr.bf16.mxu0 0
      %446 = vmatpush1.bf16.msra.mxu0 %v415
      %447 = vmatprep.subr.bf16.mxu0 0
      %448 = vmatpush1.bf16.msra.mxu0 %v416
      %449 = vmatprep.subr.bf16.mxu0 0
      %450 = vmatpush1.bf16.msra.mxu0 %v417
      %451 = vmatprep.subr.bf16.mxu0 0
      %452 = vmatpush1.bf16.msra.mxu0 %v418
      %453 = vmatprep.subr.bf16.mxu0 0
      %454 = vmatpush1.bf16.msra.mxu0 %v419
      %455 = vmatprep.subr.bf16.mxu0 0
      %456 = vmatpush1.bf16.msra.mxu0 %v420
      %457 = vmatprep.subr.bf16.mxu0 0
      %458 = vmatpush1.bf16.msra.mxu0 %v421
      %459 = vmatprep.subr.bf16.mxu0 0
      %460 = vmatpush1.bf16.msra.mxu0 %v422
      %461 = vmatprep.subr.bf16.mxu0 0
      %462 = vmatpush1.bf16.msra.mxu0 %v423
      %463 = vmatprep.subr.bf16.mxu0 0
      %464 = vmatpush1.bf16.msra.mxu0 0
      %465 = vmatprep.subr.bf16.mxu0 0
      %466 = vmatpush1.bf16.msra.mxu0 0
      %467 = vmatprep.subr.bf16.mxu0 0
      %468 = vmatpush1.bf16.msra.mxu0 0
      %469 = vmatprep.subr.bf16.mxu0 0
      %470 = vmatpush1.bf16.msra.mxu0 0
      %471 = vmatprep.mubr.bf16.mxu0 %v437
      %472 = vmatmul.mubr.bf16.gmra.mrb[0].mxu0 %v338
      %v473 = vpop.f32.mrb[0].mxu0
      %v474 = vadd.f32 0.0, %v473
      %v475 = vpop.f32.mrb[0].mxu0
      %v476 = vpop.f32.mrb[0].mxu0
      %v477 = vadd.f32 0.0, %v476
      %v478 = vpop.f32.mrb[0].mxu0
      %479 = vdwg.mxu0
      %v480 = vld [vmem:[%s5] sm:$0x1]
      %v481 = vlaneseq
      %v482 = vshrl.u32 %v481, 7
      %v483 = vsub.s32 0, %v482
      %v484 = vrot.slane %v480, %v483
      %v485 = vmul.f32 %v474, %v484
      %v486 = vmul.f32 %v477, %v484
      %v487 = vld [vmem:[%s5 + $0x1] sm:$0x1]
      %v488 = vlaneseq
      %v489 = vshrl.u32 %v488, 7
      %v490 = vsub.s32 0, %v489
      %v491 = vrot.slane %v487, %v490
      %v492 = vadd.f32 %v485, %v491
      %v493 = vadd.f32 %v486, %v491
      %v494 = vmax.f32 %v492, 0.0
      %v495 = vmax.f32 %v493, 0.0
      %496 = vst [vmem:[#allocation3 + $0x1] sm:$0xff] %v494
      %497 = vst [vmem:[#allocation3 + $0x9] sm:$0xff] %v495
      %v498 = vld [vmem:[#allocation3] sm:$0xff]
      %v499 = vld [vmem:[#allocation3 + $0x8] sm:$0xff]
      %v500 = vld [vmem:[#allocation3 + $0x1] sm:$0xff]
      %v501 = vld [vmem:[#allocation3 + $0x9] sm:$0xff]
      %v502 = vld [vmem:[#allocation3 + $0x2] sm:$0xff]
      %v503 = vld [vmem:[#allocation3 + $0xa] sm:$0xff]
      %v504 = vpack.c.bf16 %v499, %v498
      %v505 = vpack.c.bf16 %v501, %v500
      %v506 = vpack.c.bf16 %v503, %v502
      %v507 = vld [vmem:[%s2] sm:$0xf]
      %v508 = vld [vmem:[%s2 + $0x4] sm:$0xf]
      %v509 = vld [vmem:[%s2 + $0x8] sm:$0xf]
      %v510 = vld [vmem:[%s2 + $0xc] sm:$0xf]
      %v511 = vld [vmem:[%s2 + $0x10] sm:$0xf]
      %v512 = vld [vmem:[%s2 + $0x14] sm:$0xf]
      %v513 = vld [vmem:[%s2 + $0x18] sm:$0xf]
      %v514 = vld [vmem:[%s2 + $0x1c] sm:$0xf]
      %v515 = vld [vmem:[%s2 + $0x20] sm:$0xf]
      %v516 = vld [vmem:[%s2 + $0x24] sm:$0xf]
      %v517 = vld [vmem:[%s2 + $0x28] sm:$0xf]
      %v518 = vld [vmem:[%s2 + $0x2c] sm:$0xf]
      %v519 = vld [vmem:[%s2 + $0x30] sm:$0xf]
      %v520 = vld [vmem:[%s2 + $0x34] sm:$0xf]
      %v521 = vld [vmem:[%s2 + $0x38] sm:$0xf]
      %v522 = vld [vmem:[%s2 + $0x3c] sm:$0xf]
      %v523 = vld [vmem:[%s2 + $0x40] sm:$0xf]
      %v524 = vld [vmem:[%s2 + $0x44] sm:$0xf]
      %v525 = vld [vmem:[%s2 + $0x48] sm:$0xf]
      %v526 = vld [vmem:[%s2 + $0x4c] sm:$0xf]
      %v527 = vld [vmem:[%s2 + $0x50] sm:$0xf]
      %v528 = vld [vmem:[%s2 + $0x54] sm:$0xf]
      %v529 = vld [vmem:[%s2 + $0x58] sm:$0xf]
      %v530 = vld [vmem:[%s2 + $0x5c] sm:$0xf]
      %v531 = vld [vmem:[%s2 + $0x60] sm:$0xf]
      %v532 = vld [vmem:[%s2 + $0x64] sm:$0xf]
      %v533 = vld [vmem:[%s2 + $0x68] sm:$0xf]
      %v534 = vld [vmem:[%s2 + $0x6c] sm:$0xf]
      %v535 = vld [vmem:[%s2 + $0x70] sm:$0xf]
      %v536 = vld [vmem:[%s2 + $0x74] sm:$0xf]
      %v537 = vld [vmem:[%s2 + $0x78] sm:$0xf]
      %v538 = vld [vmem:[%s2 + $0x7c] sm:$0xf]
      %v539 = vld [vmem:[%s2 + $0x80] sm:$0xf]
      %v540 = vld [vmem:[%s2 + $0x84] sm:$0xf]
      %v541 = vld [vmem:[%s2 + $0x88] sm:$0xf]
      %v542 = vld [vmem:[%s2 + $0x8c] sm:$0xf]
      %v543 = vld [vmem:[%s2 + $0x90] sm:$0xf]
      %v544 = vld [vmem:[%s2 + $0x94] sm:$0xf]
      %v545 = vld [vmem:[%s2 + $0x98] sm:$0xf]
      %v546 = vld [vmem:[%s2 + $0x9c] sm:$0xf]
      %v547 = vld [vmem:[%s2 + $0xa0] sm:$0xf]
      %v548 = vld [vmem:[%s2 + $0xa4] sm:$0xf]
      %v549 = vld [vmem:[%s2 + $0xa8] sm:$0xf]
      %v550 = vld [vmem:[%s2 + $0xac] sm:$0xf]
      %v551 = vld [vmem:[%s2 + $0xb0] sm:$0xf]
      %v552 = vld [vmem:[%s2 + $0xb4] sm:$0xf]
      %v553 = vld [vmem:[%s2 + $0xb8] sm:$0xf]
      %v554 = vld [vmem:[%s2 + $0xbc] sm:$0xf]
      %v603 = vunpack.c.l.b16 %v507
      %v604 = vunpack.c.l.b16 %v508
      %v605 = vunpack.c.l.b16 %v509
      %v606 = vunpack.c.l.b16 %v510
      %v607 = vunpack.c.l.b16 %v511
      %v608 = vunpack.c.l.b16 %v512
      %v609 = vunpack.c.l.b16 %v513
      %v610 = vunpack.c.l.b16 %v514
      %v611 = vunpack.c.l.b16 %v515
      %v612 = vunpack.c.l.b16 %v516
      %v613 = vunpack.c.l.b16 %v517
      %v614 = vunpack.c.l.b16 %v518
      %v615 = vunpack.c.l.b16 %v519
      %v616 = vunpack.c.l.b16 %v520
      %v617 = vunpack.c.l.b16 %v521
      %v618 = vunpack.c.l.b16 %v522
      %v619 = vunpack.c.l.b16 %v523
      %v620 = vunpack.c.l.b16 %v524
      %v621 = vunpack.c.l.b16 %v525
      %v622 = vunpack.c.l.b16 %v526
      %v623 = vunpack.c.l.b16 %v527
      %v624 = vunpack.c.l.b16 %v528
      %v625 = vunpack.c.l.b16 %v529
      %v626 = vunpack.c.l.b16 %v530
      %v627 = vunpack.c.l.b16 %v531
      %v628 = vunpack.c.l.b16 %v532
      %v629 = vunpack.c.l.b16 %v533
      %v630 = vunpack.c.l.b16 %v534
      %v631 = vunpack.c.l.b16 %v535
      %v632 = vunpack.c.l.b16 %v536
      %v633 = vunpack.c.l.b16 %v537
      %v634 = vunpack.c.l.b16 %v538
      %v635 = vunpack.c.l.b16 %v539
      %v636 = vunpack.c.l.b16 %v540
      %v637 = vunpack.c.l.b16 %v541
      %v638 = vunpack.c.l.b16 %v542
      %v639 = vunpack.c.l.b16 %v543
      %v640 = vunpack.c.l.b16 %v544
      %v641 = vunpack.c.l.b16 %v545
      %v642 = vunpack.c.l.b16 %v546
      %v643 = vunpack.c.l.b16 %v547
      %v644 = vunpack.c.l.b16 %v548
      %v645 = vunpack.c.l.b16 %v549
      %v646 = vunpack.c.l.b16 %v550
      %v647 = vunpack.c.l.b16 %v551
      %v648 = vunpack.c.l.b16 %v552
      %v649 = vunpack.c.l.b16 %v553
      %v650 = vunpack.c.l.b16 %v554
      %v651 = vpack.c.b16 %v604, %v603
      %v652 = vpack.c.b16 %v606, %v605
      %v653 = vpack.c.b16 %v608, %v607
      %v654 = vpack.c.b16 %v610, %v609
      %v655 = vpack.c.b16 %v612, %v611
      %v656 = vpack.c.b16 %v614, %v613
      %v657 = vpack.c.b16 %v616, %v615
      %v658 = vpack.c.b16 %v618, %v617
      %v659 = vpack.c.b16 %v620, %v619
      %v660 = vpack.c.b16 %v622, %v621
      %v661 = vpack.c.b16 %v624, %v623
      %v662 = vpack.c.b16 %v626, %v625
      %v663 = vpack.c.b16 %v628, %v627
      %v664 = vpack.c.b16 %v630, %v629
      %v665 = vpack.c.b16 %v632, %v631
      %v666 = vpack.c.b16 %v634, %v633
      %v667 = vpack.c.b16 %v636, %v635
      %v668 = vpack.c.b16 %v638, %v637
      %v669 = vpack.c.b16 %v640, %v639
      %v670 = vpack.c.b16 %v642, %v641
      %v671 = vpack.c.b16 %v644, %v643
      %v672 = vpack.c.b16 %v646, %v645
      %v673 = vpack.c.b16 %v648, %v647
      %v674 = vpack.c.b16 %v650, %v649
      %699 = vmatprep.subr.bf16.mxu0 0
      %700 = vmatpush1.bf16.msra.mxu0 %v651
      %701 = vmatprep.subr.bf16.mxu0 0
      %702 = vmatpush1.bf16.msra.mxu0 %v652
      %703 = vmatprep.subr.bf16.mxu0 0
      %704 = vmatpush1.bf16.msra.mxu0 %v653
      %705 = vmatprep.subr.bf16.mxu0 0
      %706 = vmatpush1.bf16.msra.mxu0 %v654
      %707 = vmatprep.subr.bf16.mxu0 0
      %708 = vmatpush1.bf16.msra.mxu0 %v655
      %709 = vmatprep.subr.bf16.mxu0 0
      %710 = vmatpush1.bf16.msra.mxu0 %v656
      %711 = vmatprep.subr.bf16.mxu0 0
      %712 = vmatpush1.bf16.msra.mxu0 %v657
      %713 = vmatprep.subr.bf16.mxu0 0
      %714 = vmatpush1.bf16.msra.mxu0 %v658
      %715 = vmatprep.subr.bf16.mxu0 0
      %716 = vmatpush1.bf16.msra.mxu0 %v659
      %717 = vmatprep.subr.bf16.mxu0 0
      %718 = vmatpush1.bf16.msra.mxu0 %v660
      %719 = vmatprep.subr.bf16.mxu0 0
      %720 = vmatpush1.bf16.msra.mxu0 %v661
      %721 = vmatprep.subr.bf16.mxu0 0
      %722 = vmatpush1.bf16.msra.mxu0 %v662
      %723 = vmatprep.subr.bf16.mxu0 0
      %724 = vmatpush1.bf16.msra.mxu0 %v663
      %725 = vmatprep.subr.bf16.mxu0 0
      %726 = vmatpush1.bf16.msra.mxu0 %v664
      %727 = vmatprep.subr.bf16.mxu0 0
      %728 = vmatpush1.bf16.msra.mxu0 %v665
      %729 = vmatprep.subr.bf16.mxu0 0
      %730 = vmatpush1.bf16.msra.mxu0 %v666
      %731 = vmatprep.mubr.bf16.mxu0 %v505
      %732 = vmatmul.mubr.bf16.gmra.mrb[0].mxu0 %v504
      %v733 = vpop.f32.mrb[0].mxu0
      %v734 = vadd.f32 0.0, %v733
      %v735 = vpop.f32.mrb[0].mxu0
      %v736 = vpop.f32.mrb[0].mxu0
      %v737 = vadd.f32 0.0, %v736
      %v738 = vpop.f32.mrb[0].mxu0
      %739 = vdwg.mxu0
      %740 = vmatprep.subr.bf16.mxu0 0
      %741 = vmatpush1.bf16.msra.mxu0 %v667
      %742 = vmatprep.subr.bf16.mxu0 0
      %743 = vmatpush1.bf16.msra.mxu0 %v668
      %744 = vmatprep.subr.bf16.mxu0 0
      %745 = vmatpush1.bf16.msra.mxu0 %v669
      %746 = vmatprep.subr.bf16.mxu0 0
      %747 = vmatpush1.bf16.msra.mxu0 %v670
      %748 = vmatprep.subr.bf16.mxu0 0
      %749 = vmatpush1.bf16.msra.mxu0 %v671
      %750 = vmatprep.subr.bf16.mxu0 0
      %751 = vmatpush1.bf16.msra.mxu0 %v672
      %752 = vmatprep.subr.bf16.mxu0 0
      %753 = vmatpush1.bf16.msra.mxu0 %v673
      %754 = vmatprep.subr.bf16.mxu0 0
      %755 = vmatpush1.bf16.msra.mxu0 %v674
      %756 = vmatprep.subr.bf16.mxu0 0
      %757 = vmatpush1.bf16.msra.mxu0 0
      %758 = vmatprep.subr.bf16.mxu0 0
      %759 = vmatpush1.bf16.msra.mxu0 0
      %760 = vmatprep.subr.bf16.mxu0 0
      %761 = vmatpush1.bf16.msra.mxu0 0
      %762 = vmatprep.subr.bf16.mxu0 0
      %763 = vmatpush1.bf16.msra.mxu0 0
      %764 = vmatprep.subr.bf16.mxu0 0
      %765 = vmatpush1.bf16.msra.mxu0 0
      %766 = vmatprep.subr.bf16.mxu0 0
      %767 = vmatpush1.bf16.msra.mxu0 0
      %768 = vmatprep.subr.bf16.mxu0 0
      %769 = vmatpush1.bf16.msra.mxu0 0
      %770 = vmatprep.subr.bf16.mxu0 0
      %771 = vmatpush1.bf16.msra.mxu0 0
      %772 = vmatprep.mubr.bf16.mxu0 0
      %773 = vmatmul.mubr.bf16.gmra.mrb[0].mxu0 %v506
      %v774 = vpop.f32.mrb[0].mxu0
      %v775 = vadd.f32 %v734, %v774
      %v776 = vpop.f32.mrb[0].mxu0
      %v777 = vpop.f32.mrb[0].mxu0
      %v778 = vadd.f32 %v737, %v777
      %v779 = vpop.f32.mrb[0].mxu0
      %780 = vdwg.mxu0
      %v781 = vld [vmem:[%s6] sm:$0x1]
      %v782 = vlaneseq
      %v783 = vshrl.u32 %v782, 7
      %v784 = vsub.s32 0, %v783
      %v785 = vrot.slane %v781, %v784
      %v786 = vmul.f32 %v775, %v785
      %v787 = vmul.f32 %v778, %v785
      %v788 = vld [vmem:[%s6 + $0x1] sm:$0x1]
      %v789 = vlaneseq
      %v790 = vshrl.u32 %v789, 7
      %v791 = vsub.s32 0, %v790
      %v792 = vrot.slane %v788, %v791
      %v793 = vadd.f32 %v786, %v792
      %v794 = vadd.f32 %v787, %v792
      %v795 = vmax.f32 %v793, 0.0
      %v796 = vmax.f32 %v794, 0.0
      %797 = vst [vmem:[#allocation4] sm:$0xff] %v795
      %798 = vst [vmem:[#allocation4 + $0x8] sm:$0xff] %v796
      %v799 = vld [vmem:[#allocation4] sm:$0xff]
      %v800 = vld [vmem:[#allocation4 + $0x8] sm:$0xff]
      %v801 = vld [vmem:[#allocation4 + $0x1] sm:$0xff]
      %v802 = vld [vmem:[#allocation4 + $0x9] sm:$0xff]
      %v803 = vpack.c.bf16 %v796, %v795
      %v804 = vld [vmem:[%s3] sm:$0xf]
      %v805 = vld [vmem:[%s3 + $0x4] sm:$0xf]
      %v806 = vld [vmem:[%s3 + $0x8] sm:$0xf]
      %v807 = vld [vmem:[%s3 + $0xc] sm:$0xf]
      %v808 = vld [vmem:[%s3 + $0x10] sm:$0xf]
      %v809 = vld [vmem:[%s3 + $0x14] sm:$0xf]
      %v810 = vld [vmem:[%s3 + $0x18] sm:$0xf]
      %v811 = vld [vmem:[%s3 + $0x1c] sm:$0xf]
      %v812 = vld [vmem:[%s3 + $0x20] sm:$0xf]
      %v813 = vld [vmem:[%s3 + $0x24] sm:$0xf]
      %v814 = vld [vmem:[%s3 + $0x28] sm:$0xf]
      %v815 = vld [vmem:[%s3 + $0x2c] sm:$0xf]
      %v816 = vld [vmem:[%s3 + $0x30] sm:$0xf]
      %v817 = vld [vmem:[%s3 + $0x34] sm:$0xf]
      %v818 = vld [vmem:[%s3 + $0x38] sm:$0xf]
      %v819 = vld [vmem:[%s3 + $0x3c] sm:$0xf]
      %v836 = vunpack.c.l.b16 %v804
      %v837 = vunpack.c.l.b16 %v805
      %v838 = vunpack.c.l.b16 %v806
      %v839 = vunpack.c.l.b16 %v807
      %v840 = vunpack.c.l.b16 %v808
      %v841 = vunpack.c.l.b16 %v809
      %v842 = vunpack.c.l.b16 %v810
      %v843 = vunpack.c.l.b16 %v811
      %v844 = vunpack.c.l.b16 %v812
      %v845 = vunpack.c.l.b16 %v813
      %v846 = vunpack.c.l.b16 %v814
      %v847 = vunpack.c.l.b16 %v815
      %v848 = vunpack.c.l.b16 %v816
      %v849 = vunpack.c.l.b16 %v817
      %v850 = vunpack.c.l.b16 %v818
      %v851 = vunpack.c.l.b16 %v819
      %v852 = vpack.c.b16 %v837, %v836
      %v853 = vpack.c.b16 %v839, %v838
      %v854 = vpack.c.b16 %v841, %v840
      %v855 = vpack.c.b16 %v843, %v842
      %v856 = vpack.c.b16 %v845, %v844
      %v857 = vpack.c.b16 %v847, %v846
      %v858 = vpack.c.b16 %v849, %v848
      %v859 = vpack.c.b16 %v851, %v850
      %868 = vmatprep.subr.bf16.mxu0 0
      %869 = vmatpush1.bf16.msra.mxu0 %v852
      %870 = vmatprep.subr.bf16.mxu0 0
      %871 = vmatpush1.bf16.msra.mxu0 %v853
      %872 = vmatprep.subr.bf16.mxu0 0
      %873 = vmatpush1.bf16.msra.mxu0 %v854
      %874 = vmatprep.subr.bf16.mxu0 0
      %875 = vmatpush1.bf16.msra.mxu0 %v855
      %876 = vmatprep.subr.bf16.mxu0 0
      %877 = vmatpush1.bf16.msra.mxu0 %v856
      %878 = vmatprep.subr.bf16.mxu0 0
      %879 = vmatpush1.bf16.msra.mxu0 %v857
      %880 = vmatprep.subr.bf16.mxu0 0
      %881 = vmatpush1.bf16.msra.mxu0 %v858
      %882 = vmatprep.subr.bf16.mxu0 0
      %883 = vmatpush1.bf16.msra.mxu0 %v859
      %884 = vmatprep.subr.bf16.mxu0 0
      %885 = vmatpush1.bf16.msra.mxu0 0
      %886 = vmatprep.subr.bf16.mxu0 0
      %887 = vmatpush1.bf16.msra.mxu0 0
      %888 = vmatprep.subr.bf16.mxu0 0
      %889 = vmatpush1.bf16.msra.mxu0 0
      %890 = vmatprep.subr.bf16.mxu0 0
      %891 = vmatpush1.bf16.msra.mxu0 0
      %892 = vmatprep.subr.bf16.mxu0 0
      %893 = vmatpush1.bf16.msra.mxu0 0
      %894 = vmatprep.subr.bf16.mxu0 0
      %895 = vmatpush1.bf16.msra.mxu0 0
      %896 = vmatprep.subr.bf16.mxu0 0
      %897 = vmatpush1.bf16.msra.mxu0 0
      %898 = vmatprep.subr.bf16.mxu0 0
      %899 = vmatpush1.bf16.msra.mxu0 0
      %900 = vmatprep.mubr.bf16.mxu0 0
      %901 = vmatmul.mubr.bf16.gmra.mrb[0].mxu0 %v803
      %v902 = vpop.f32.mrb[0].mxu0
      %v903 = vadd.f32 0.0, %v902
      %v904 = vpop.f32.mrb[0].mxu0
      %v905 = vpop.f32.mrb[0].mxu0
      %v906 = vadd.f32 0.0, %v905
      %v907 = vpop.f32.mrb[0].mxu0
      %908 = vdwg.mxu0
      %v909 = vpack.c.bf16 %v800, %v799
      %v910 = vpack.c.bf16 %v802, %v801
      %v911 = vld [vmem:[%s4] sm:$0xf]
      %v912 = vld [vmem:[%s4 + $0x4] sm:$0xf]
      %v913 = vld [vmem:[%s4 + $0x8] sm:$0xf]
      %v914 = vld [vmem:[%s4 + $0xc] sm:$0xf]
      %v915 = vld [vmem:[%s4 + $0x10] sm:$0xf]
      %v916 = vld [vmem:[%s4 + $0x14] sm:$0xf]
      %v917 = vld [vmem:[%s4 + $0x18] sm:$0xf]
      %v918 = vld [vmem:[%s4 + $0x1c] sm:$0xf]
      %v919 = vld [vmem:[%s4 + $0x20] sm:$0xf]
      %v920 = vld [vmem:[%s4 + $0x24] sm:$0xf]
      %v921 = vld [vmem:[%s4 + $0x28] sm:$0xf]
      %v922 = vld [vmem:[%s4 + $0x2c] sm:$0xf]
      %v923 = vld [vmem:[%s4 + $0x30] sm:$0xf]
      %v924 = vld [vmem:[%s4 + $0x34] sm:$0xf]
      %v925 = vld [vmem:[%s4 + $0x38] sm:$0xf]
      %v926 = vld [vmem:[%s4 + $0x3c] sm:$0xf]
      %v927 = vld [vmem:[%s4 + $0x40] sm:$0xf]
      %v928 = vld [vmem:[%s4 + $0x44] sm:$0xf]
      %v929 = vld [vmem:[%s4 + $0x48] sm:$0xf]
      %v930 = vld [vmem:[%s4 + $0x4c] sm:$0xf]
      %v931 = vld [vmem:[%s4 + $0x50] sm:$0xf]
      %v932 = vld [vmem:[%s4 + $0x54] sm:$0xf]
      %v933 = vld [vmem:[%s4 + $0x58] sm:$0xf]
      %v934 = vld [vmem:[%s4 + $0x5c] sm:$0xf]
      %v935 = vld [vmem:[%s4 + $0x60] sm:$0xf]
      %v936 = vld [vmem:[%s4 + $0x64] sm:$0xf]
      %v937 = vld [vmem:[%s4 + $0x68] sm:$0xf]
      %v938 = vld [vmem:[%s4 + $0x6c] sm:$0xf]
      %v939 = vld [vmem:[%s4 + $0x70] sm:$0xf]
      %v940 = vld [vmem:[%s4 + $0x74] sm:$0xf]
      %v941 = vld [vmem:[%s4 + $0x78] sm:$0xf]
      %v942 = vld [vmem:[%s4 + $0x7c] sm:$0xf]
      %v975 = vunpack.c.l.b16 %v911
      %v976 = vunpack.c.l.b16 %v912
      %v977 = vunpack.c.l.b16 %v913
      %v978 = vunpack.c.l.b16 %v914
      %v979 = vunpack.c.l.b16 %v915
      %v980 = vunpack.c.l.b16 %v916
      %v981 = vunpack.c.l.b16 %v917
      %v982 = vunpack.c.l.b16 %v918
      %v983 = vunpack.c.l.b16 %v919
      %v984 = vunpack.c.l.b16 %v920
      %v985 = vunpack.c.l.b16 %v921
      %v986 = vunpack.c.l.b16 %v922
      %v987 = vunpack.c.l.b16 %v923
      %v988 = vunpack.c.l.b16 %v924
      %v989 = vunpack.c.l.b16 %v925
      %v990 = vunpack.c.l.b16 %v926
      %v991 = vunpack.c.l.b16 %v927
      %v992 = vunpack.c.l.b16 %v928
      %v993 = vunpack.c.l.b16 %v929
      %v994 = vunpack.c.l.b16 %v930
      %v995 = vunpack.c.l.b16 %v931
      %v996 = vunpack.c.l.b16 %v932
      %v997 = vunpack.c.l.b16 %v933
      %v998 = vunpack.c.l.b16 %v934
      %v999 = vunpack.c.l.b16 %v935
      %v1000 = vunpack.c.l.b16 %v936
      %v1001 = vunpack.c.l.b16 %v937
      %v1002 = vunpack.c.l.b16 %v938
      %v1003 = vunpack.c.l.b16 %v939
      %v1004 = vunpack.c.l.b16 %v940
      %v1005 = vunpack.c.l.b16 %v941
      %v1006 = vunpack.c.l.b16 %v942
      %v1007 = vpack.c.b16 %v976, %v975
      %v1008 = vpack.c.b16 %v978, %v977
      %v1009 = vpack.c.b16 %v980, %v979
      %v1010 = vpack.c.b16 %v982, %v981
      %v1011 = vpack.c.b16 %v984, %v983
      %v1012 = vpack.c.b16 %v986, %v985
      %v1013 = vpack.c.b16 %v988, %v987
      %v1014 = vpack.c.b16 %v990, %v989
      %v1015 = vpack.c.b16 %v992, %v991
      %v1016 = vpack.c.b16 %v994, %v993
      %v1017 = vpack.c.b16 %v996, %v995
      %v1018 = vpack.c.b16 %v998, %v997
      %v1019 = vpack.c.b16 %v1000, %v999
      %v1020 = vpack.c.b16 %v1002, %v1001
      %v1021 = vpack.c.b16 %v1004, %v1003
      %v1022 = vpack.c.b16 %v1006, %v1005
      %1039 = vmatprep.subr.bf16.mxu0 0
      %1040 = vmatpush1.bf16.msra.mxu0 %v1007
      %1041 = vmatprep.subr.bf16.mxu0 0
      %1042 = vmatpush1.bf16.msra.mxu0 %v1008
      %1043 = vmatprep.subr.bf16.mxu0 0
      %1044 = vmatpush1.bf16.msra.mxu0 %v1009
      %1045 = vmatprep.subr.bf16.mxu0 0
      %1046 = vmatpush1.bf16.msra.mxu0 %v1010
      %1047 = vmatprep.subr.bf16.mxu0 0
      %1048 = vmatpush1.bf16.msra.mxu0 %v1011
      %1049 = vmatprep.subr.bf16.mxu0 0
      %1050 = vmatpush1.bf16.msra.mxu0 %v1012
      %1051 = vmatprep.subr.bf16.mxu0 0
      %1052 = vmatpush1.bf16.msra.mxu0 %v1013
      %1053 = vmatprep.subr.bf16.mxu0 0
      %1054 = vmatpush1.bf16.msra.mxu0 %v1014
      %1055 = vmatprep.subr.bf16.mxu0 0
      %1056 = vmatpush1.bf16.msra.mxu0 %v1015
      %1057 = vmatprep.subr.bf16.mxu0 0
      %1058 = vmatpush1.bf16.msra.mxu0 %v1016
      %1059 = vmatprep.subr.bf16.mxu0 0
      %1060 = vmatpush1.bf16.msra.mxu0 %v1017
      %1061 = vmatprep.subr.bf16.mxu0 0
      %1062 = vmatpush1.bf16.msra.mxu0 %v1018
      %1063 = vmatprep.subr.bf16.mxu0 0
      %1064 = vmatpush1.bf16.msra.mxu0 %v1019
      %1065 = vmatprep.subr.bf16.mxu0 0
      %1066 = vmatpush1.bf16.msra.mxu0 %v1020
      %1067 = vmatprep.subr.bf16.mxu0 0
      %1068 = vmatpush1.bf16.msra.mxu0 %v1021
      %1069 = vmatprep.subr.bf16.mxu0 0
      %1070 = vmatpush1.bf16.msra.mxu0 %v1022
      %1071 = vmatprep.mubr.bf16.mxu0 %v910
      %1072 = vmatmul.mubr.bf16.gmra.mrb[0].mxu0 %v909
      %v1073 = vpop.f32.mrb[0].mxu0
      %v1074 = vadd.f32 0.0, %v1073
      %v1075 = vpop.f32.mrb[0].mxu0
      %v1076 = vpop.f32.mrb[0].mxu0
      %v1077 = vadd.f32 0.0, %v1076
      %v1078 = vpop.f32.mrb[0].mxu0
      %1079 = vdwg.mxu0
      %v1080 = vld [vmem:[%s7] sm:$0x1]
      %v1081 = vld [vmem:[%s7 + $0x1] sm:$0x1]
      %v1082 = vlaneseq
      %v1083 = vshrl.u32 %v1082, 7
      %v1084 = vsub.s32 0, %v1083
      %v1085 = vrot.slane %v1080, %v1084
      %v1086 = vmul.f32 %v903, %v1085
      %v1087 = vmul.f32 %v906, %v1085
      %v1088 = vlaneseq
      %v1089 = vshrl.u32 %v1088, 7
      %v1090 = vsub.s32 0, %v1089
      %v1091 = vrot.slane %v1081, %v1090
      %v1092 = vadd.f32 %v1086, %v1091
      %v1093 = vadd.f32 %v1087, %v1091
      %v1094 = vmax.f32 %v1092, 0.0
      %v1095 = vmax.f32 %v1093, 0.0
      %1096 = vst [vmem:[%s305] sm:$0xff] %v1094
      %1097 = vst [vmem:[%s305 + $0x8] sm:$0xff] %v1095
      %v1098 = vmul.f32 %v1074, %v1085
      %v1099 = vmul.f32 %v1077, %v1085
      %v1100 = vadd.f32 %v1098, %v1091
      %v1101 = vadd.f32 %v1099, %v1091
      %v1102 = vmax.f32 %v1100, 0.0
      %v1103 = vmax.f32 %v1101, 0.0
      %s1104 = scalar_lea.vmem %s305, 16
      %1105 = vst [vmem:[%s1104] sm:$0xff] %v1102
      %1106 = vst [vmem:[%s1104 + $0x8] sm:$0xff] %v1103
      %p1107 = scmp.lt.s32.totalorder %s19, 1
      %s1108 = scalar_select %p1107, %s19, 1
      %s1109 = smul.addr %s1108, 4
      %s1110 = smul.addr %s1109, 8
      %s1111 = scalar_lea.vmem %s8, %s1110
      // Predicated region
      $region53: #{decoder_block_forward.1} parent=51 // pred_check
        %p1112 = pneg %p210
      $region54: #{decoder_block_forward.1} parent=51 // pred_check_branch
        %1114 = sbr.rel (%p1112) target = $region56
      $region55: #{decoder_block_forward.1} parent=51 // pred_region
        _
      $region56: #{decoder_block_forward.1} parent=51 // pred_fallthru
        _
    $region52: #{decoder_block_forward.1} parent=5 // pred_fallthru
      _
    %p1115 = scmp.le.s32.totalorder 2, %s14
    // Predicated region
    $region57: #{decoder_block_forward.1} parent=5 // pred_check
      %p1116 = pneg %p1115
    $region58: #{decoder_block_forward.1} parent=5 // pred_check_branch
      %1118 = sbr.rel (%p1116) target = $region60
    $region59: #{decoder_block_forward.1} parent=5 // pred_region
      %s1119 = ssub.s32 %s14, 2
      // Predicated region
      $region61: #{decoder_block_forward.1} parent=59 // pred_check
        %p1120 = pneg %p216
      $region62: #{decoder_block_forward.1} parent=59 // pred_check_branch
        %1122 = sbr.rel (%p1120) target = $region64
      $region63: #{decoder_block_forward.1} parent=59 // pred_region
        %p1123 = scmp.lt.s32.totalorder %s20, 1
        %s1124 = scalar_select %p1123, %s20, 1
        %s1125 = smul.addr %s1124, 4
        %s1126 = smul.addr %s1125, 8
        %s1127 = scalar_lea.vmem %s8, %s1126
      $region64: #{decoder_block_forward.1} parent=59 // pred_fallthru
        _
    $region60: #{decoder_block_forward.1} parent=5 // pred_fallthru
      _
  $region6: #{decoder_block_forward.1} parent=0 // loop_footer
    %s18 = sadd.s32 1, %s14
  $region7: #{decoder_block_forward.1} parent=0 // loop_footer_branch
    %13 = sbr.rel target = $region3
  $region8: #{decoder_block_forward.1} parent=0 // loop_exit
    _

</llo_original>
